<compile_context>
chip_gen: v7x
topology: tpu7x:2x2x1
jax: 0.10.0
libtpu: 0.0.40
codegen_flags: <defaults>
</compile_context>

<pallas_src>
import math

import jax
import jax.numpy as jnp
from jax import lax
from jax.experimental import pallas as pl
from jax.experimental.pallas import tpu as pltpu

D_MODEL = 32
N_HEADS = 4
D_K = D_MODEL // N_HEADS
D_FF = 64
EPS = 1e-6
NEG_INF = -1e9
SCALE = 1.0 / math.sqrt(D_K)
LANES = 128
ROW_ALIGN = 8            # sublane alignment for slab row offsets


# -------------------------------------------------------------- param packing
def _round_up(n, m):
    return -(-n // m) * m


def _pack_params(params):
    """Pack every weight/bias into one lane-padded (rows, 128) f32 slab.

    Returns (slab, offsets) with offsets[name] = (row_start, rows, cols);
    row_start is a multiple of 8 (aligned sublane loads) and cols <= 128.
    """
    aw, ab, lng, lnb, w1, b1, w2, b2 = params
    sa_wqkv = jnp.concatenate([aw[0, 0], aw[0, 1], aw[0, 2]], axis=1)   # (D, 3D)
    sa_bqkv = jnp.concatenate([ab[0, 0], ab[0, 1], ab[0, 2]], axis=1)   # (1, 3D)
    ca_wkv = jnp.concatenate([aw[1, 1], aw[1, 2]], axis=1)              # (D, 2D)
    ca_bkv = jnp.concatenate([ab[1, 1], ab[1, 2]], axis=1)              # (1, 2D)

    pieces = [
        ("sa_wqkv", sa_wqkv), ("sa_wo", aw[0, 3]),
        ("ca_wq", aw[1, 0]), ("ca_wkv", ca_wkv), ("ca_wo", aw[1, 3]),
        ("w1", w1), ("w2", w2),
        ("sa_bqkv", sa_bqkv), ("sa_bo", ab[0, 3]),
        ("ca_bq", ab[1, 0]), ("ca_bkv", ca_bkv), ("ca_bo", ab[1, 3]),
        ("b1", b1), ("b2", b2),
        ("lng", lng.reshape(3, D_MODEL)), ("lnb", lnb.reshape(3, D_MODEL)),
    ]
    offsets, rows, r = {}, [], 0
    for name, arr in pieces:
        arr = arr.astype(jnp.float32)
        nr, nc = arr.shape
        nr_pad = _round_up(nr, ROW_ALIGN)
        offsets[name] = (r, nr, nc)
        rows.append(jnp.pad(arr, ((0, nr_pad - nr), (0, LANES - nc))))
        r += nr_pad
    return jnp.concatenate(rows, axis=0), offsets


# ---------------------------------------------------------------- kernel math
def _layer_norm(x, g, b):
    # annotated-transformer LayerNorm: unbiased std, a_2*(x-mean)/(std+eps)+b_2
    mean = jnp.mean(x, axis=-1, keepdims=True)
    var = jnp.sum((x - mean) ** 2, axis=-1, keepdims=True) / (x.shape[-1] - 1)
    return g * (x - mean) / (jnp.sqrt(var) + EPS) + b


def _attention(q, k, v, bias, wo, bo, ctx_ref):
    # q: (R, D) already scaled by 1/sqrt(d_k); k, v: (C, D)
    # bias: additive mask of shape (R, C); wo: (D, D); bo: (1, D)
    # Per-head context is stored into its lane slice of the VMEM scratch, then one
    # (R, D) @ (D, D) output projection runs on the MXU.
    for h in range(N_HEADS):
        sl = slice(h * D_K, (h + 1) * D_K)
        s = lax.dot_general(q[:, sl], k[:, sl], (((1,), (1,)), ((), ())),
                            preferred_element_type=jnp.float32)
        s = s + bias
        s = s - jnp.max(s, axis=-1, keepdims=True)
        p = jnp.exp(s)
        p = p * pl.reciprocal(jnp.sum(p, axis=-1, keepdims=True), approx=True)
        ctx_ref[:, sl] = jnp.dot(p, v[:, sl], preferred_element_type=jnp.float32)
    return jnp.dot(ctx_ref[...], wo, preferred_element_type=jnp.float32) + bo


# ------------------------------------------------------------------- wrapper
def decoder_layer(x, memory, tgt_mask, src_mask, params):
    B, T, D = x.shape
    S = memory.shape[1]
    BT, BS = B * T, B * S

    pslab, off = _pack_params(params)

    # Additive block-diagonal biases (batch folded into the row/key axes):
    # cross-batch key positions get -1e9, so one softmax over the flattened key
    # axis equals the per-batch masked softmax.
    tb = jnp.where(tgt_mask == 0, NEG_INF, 0.0).astype(jnp.float32)              # (B,T,T)
    sb = jnp.broadcast_to(jnp.where(src_mask == 0, NEG_INF, 0.0),
                          (B, T, S)).astype(jnp.float32)                         # (B,T,S)
    self_bias = jnp.full((BT, BT), NEG_INF, jnp.float32)
    cross_bias = jnp.full((BT, BS), NEG_INF, jnp.float32)
    for b in range(B):
        self_bias = self_bias.at[b * T:(b + 1) * T, b * T:(b + 1) * T].set(tb[b])
        cross_bias = cross_bias.at[b * T:(b + 1) * T, b * S:(b + 1) * S].set(sb[b])

    def wslice(p_ref, name):
        r, nr, nc = off[name]
        return p_ref[r:r + nr, 0:nc]          # static, 8-row-aligned slice -> load

    def kernel(x_ref, m_ref, tb_ref, sb_ref, p_ref, o_ref, ctx_ref):
        x = x_ref[...]                         # (BT, D)
        mem = m_ref[...]                       # (BS, D)
        lng = wslice(p_ref, "lng")             # (3, D)
        lnb = wslice(p_ref, "lnb")             # (3, D)

        # ---- sublayer 0: x + self_attn(LN(x), LN(x), LN(x), tgt_mask)
        xn = _layer_norm(x, lng[0:1], lnb[0:1])
        qkv = jnp.dot(xn, wslice(p_ref, "sa_wqkv"),
                      preferred_element_type=jnp.float32) + wslice(p_ref, "sa_bqkv")
        x = x + _attention(qkv[:, :D] * SCALE, qkv[:, D:2 * D], qkv[:, 2 * D:3 * D],
                           tb_ref[...], wslice(p_ref, "sa_wo"),
                           wslice(p_ref, "sa_bo"), ctx_ref)

        # ---- sublayer 1: x + src_attn(LN(x), memory, memory, src_mask)
        xn = _layer_norm(x, lng[1:2], lnb[1:2])
        q = (jnp.dot(xn, wslice(p_ref, "ca_wq"),
                     preferred_element_type=jnp.float32) + wslice(p_ref, "ca_bq")) * SCALE
        kv = jnp.dot(mem, wslice(p_ref, "ca_wkv"),
                     preferred_element_type=jnp.float32) + wslice(p_ref, "ca_bkv")
        x = x + _attention(q, kv[:, :D], kv[:, D:2 * D],
                           sb_ref[...], wslice(p_ref, "ca_wo"),
                           wslice(p_ref, "ca_bo"), ctx_ref)

        # ---- sublayer 2: x + feed_forward(LN(x))
        xn = _layer_norm(x, lng[2:3], lnb[2:3])
        hid = jnp.maximum(jnp.dot(xn, wslice(p_ref, "w1"),
                                  preferred_element_type=jnp.float32)
                          + wslice(p_ref, "b1"), 0.0)
        x = x + jnp.dot(hid, wslice(p_ref, "w2"),
                        preferred_element_type=jnp.float32) + wslice(p_ref, "b2")

        o_ref[...] = x

    out = pl.pallas_call(
        kernel,
        out_shape=jax.ShapeDtypeStruct((BT, D), jnp.float32),
        in_specs=[pl.BlockSpec(memory_space=pltpu.MemorySpace.VMEM)] * 5,
        out_specs=pl.BlockSpec(memory_space=pltpu.MemorySpace.VMEM),
        scratch_shapes=[pltpu.VMEM((BT, D), jnp.float32)],
    )(x.reshape(BT, D), memory.reshape(BS, D), self_bias, cross_bias, pslab)
    return out.reshape(B, T, D)


# --------------------------------------------------------- pure-JAX reference
def _ref_ln(x, g, b):
    mean = jnp.mean(x, axis=-1, keepdims=True)
    var = jnp.sum((x - mean) ** 2, axis=-1, keepdims=True) / (x.shape[-1] - 1)
    return g * (x - mean) / (jnp.sqrt(var) + EPS) + b


def _ref_mha(q_in, kv_in, mask, w, bvec):
    B, Tq, _ = q_in.shape
    Tk = kv_in.shape[1]
    q = q_in @ w[0] + bvec[0, 0]
    k = kv_in @ w[1] + bvec[1, 0]
    v = kv_in @ w[2] + bvec[2, 0]
    q = q.reshape(B, Tq, N_HEADS, D_K).transpose(0, 2, 1, 3)
    k = k.reshape(B, Tk, N_HEADS, D_K).transpose(0, 2, 1, 3)
    v = v.reshape(B, Tk, N_HEADS, D_K).transpose(0, 2, 1, 3)
    s = jnp.einsum("bhqd,bhkd->bhqk", q, k) / math.sqrt(D_K)
    s = jnp.where(mask[:, None, :, :] == 0, -1e9, s)
    p = jax.nn.softmax(s, axis=-1)
    o = jnp.einsum("bhqk,bhkd->bhqd", p, v).transpose(0, 2, 1, 3).reshape(B, Tq, D_MODEL)
    return o @ w[3] + bvec[3, 0]


def decoder_layer_ref(x, memory, tgt_mask, src_mask, params):
    aw, ab, lng, lnb, w1, b1, w2, b2 = params
    xn = _ref_ln(x, lng[0], lnb[0])
    x = x + _ref_mha(xn, xn, tgt_mask, aw[0], ab[0])
    xn = _ref_ln(x, lng[1], lnb[1])
    x = x + _ref_mha(xn, memory, src_mask, aw[1], ab[1])
    xn = _ref_ln(x, lng[2], lnb[2])
    return x + jnp.maximum(xn @ w1 + b1, 0.0) @ w2 + b2


# ---------------------------------------------------------------------- main
if __name__ == "__main__":
    B, T, S = 2, 8, 8
    key = jax.random.PRNGKey(0)
    ks = jax.random.split(key, 10)

    x = jax.random.normal(ks[0], (B, T, D_MODEL), jnp.float32)
    memory = jax.random.normal(ks[1], (B, S, D_MODEL), jnp.float32)

    # masks: 1 = attend, 0 = masked (matches masked_fill(mask == 0, -1e9))
    tgt_mask = jnp.broadcast_to(jnp.tril(jnp.ones((T, T), jnp.float32)), (B, T, T))
    src_lens = jnp.array([S, S - 2], jnp.int32)
    src_mask = (jnp.arange(S)[None, None, :] < src_lens[:, None, None]).astype(jnp.float32)

    # deterministic synthetic parameters (shapes from the module __init__)
    attn_w = 0.1 * jax.random.normal(ks[2], (2, 4, D_MODEL, D_MODEL), jnp.float32)
    attn_b = 0.1 * jax.random.normal(ks[3], (2, 4, 1, D_MODEL), jnp.float32)
    ln_g = jnp.ones((3, 1, D_MODEL), jnp.float32) \
        + 0.05 * jax.random.normal(ks[4], (3, 1, D_MODEL), jnp.float32)
    ln_b = 0.05 * jax.random.normal(ks[5], (3, 1, D_MODEL), jnp.float32)
    ff_w1 = 0.1 * jax.random.normal(ks[6], (D_MODEL, D_FF), jnp.float32)
    ff_b1 = 0.1 * jax.random.normal(ks[7], (1, D_FF), jnp.float32)
    ff_w2 = 0.1 * jax.random.normal(ks[8], (D_FF, D_MODEL), jnp.float32)
    ff_b2 = 0.1 * jax.random.normal(ks[9], (1, D_MODEL), jnp.float32)
    params = (attn_w, attn_b, ln_g, ln_b, ff_w1, ff_b1, ff_w2, ff_b2)

    out = jax.jit(decoder_layer)(x, memory, tgt_mask, src_mask, params)
    out = jax.block_until_ready(out)

    ref = decoder_layer_ref(x, memory, tgt_mask, src_mask, params)
    assert out.shape == (B, T, D_MODEL)
    assert bool(jnp.all(jnp.isfinite(out)))
    # default (single-pass) MXU matmul precision with f32 accumulation -> ~1e-3-level
    # per-element error; compare at a tolerance that absorbs it.
    assert bool(jnp.allclose(out, ref, atol=2e-2, rtol=2e-2)), "mismatch vs reference"

    # TODO(synk): dropout is implemented as identity (eval mode); training-mode
    # dropout would need pltpu.prng_* inside the kernel.
    print("KERNEL_OK")
</pallas_src>

<mosaic_0001>
module attributes {stable_mosaic.version = 11 : i64} {
  func.func @kernel(%arg0: memref<16x32xf32, #tpu.memory_space<vmem>>, %arg1: memref<16x32xf32, #tpu.memory_space<vmem>>, %arg2: memref<16x16xf32, #tpu.memory_space<vmem>>, %arg3: memref<16x16xf32, #tpu.memory_space<vmem>>, %arg4: memref<328x128xf32, #tpu.memory_space<vmem>>, %arg5: memref<16x32xf32, #tpu.memory_space<vmem>>, %arg6: memref<16x32xf32, #tpu.memory_space<vmem>>) attributes {dimension_semantics = [], scalar_prefetch = 0 : i64, scratch_operands = 1 : i64, tpu.core_type = #tpu.core_type<tc>} {
    %c0 = arith.constant 0 : index
    %c0_0 = arith.constant 0 : index
    %0 = vector.load %arg0[%c0, %c0_0] : memref<16x32xf32, #tpu.memory_space<vmem>>, vector<16x32xf32>
    %c0_1 = arith.constant 0 : index
    %c0_2 = arith.constant 0 : index
    %1 = vector.load %arg1[%c0_1, %c0_2] : memref<16x32xf32, #tpu.memory_space<vmem>>, vector<16x32xf32>
    %c312 = arith.constant 312 : index
    %c0_3 = arith.constant 0 : index
    %2 = vector.load %arg4[%c312, %c0_3] : memref<328x128xf32, #tpu.memory_space<vmem>>, vector<3x32xf32>
    %c320 = arith.constant 320 : index
    %c0_4 = arith.constant 0 : index
    %3 = vector.load %arg4[%c320, %c0_4] : memref<328x128xf32, #tpu.memory_space<vmem>>, vector<3x32xf32>
    %4 = vector.extract_strided_slice %2 {offsets = [0, 0], sizes = [1, 32], strides = [1, 1]} : vector<3x32xf32> to vector<1x32xf32>
    %5 = vector.extract_strided_slice %3 {offsets = [0, 0], sizes = [1, 32], strides = [1, 1]} : vector<3x32xf32> to vector<1x32xf32>
    %cst = arith.constant dense<0.000000e+00> : vector<16xf32>
    %6 = vector.multi_reduction <add>, %0, %cst [1] : vector<16x32xf32> to vector<16xf32>
    %7 = vector.shape_cast %6 : vector<16xf32> to vector<16x1xf32>
    %cst_5 = arith.constant 3.200000e+01 : f32
    %8 = vector.broadcast %cst_5 : f32 to vector<16x1xf32>
    %9 = arith.divf %7, %8 : vector<16x1xf32>
    %10 = vector.broadcast %9 : vector<16x1xf32> to vector<16x32xf32>
    %11 = arith.subf %0, %10 : vector<16x32xf32>
    %12 = arith.mulf %11, %11 : vector<16x32xf32>
    %cst_6 = arith.constant dense<0.000000e+00> : vector<16xf32>
    %13 = vector.multi_reduction <add>, %12, %cst_6 [1] : vector<16x32xf32> to vector<16xf32>
    %14 = vector.shape_cast %13 : vector<16xf32> to vector<16x1xf32>
    %cst_7 = arith.constant 3.100000e+01 : f32
    %15 = vector.broadcast %cst_7 : f32 to vector<16x1xf32>
    %16 = arith.divf %14, %15 : vector<16x1xf32>
    %17 = vector.broadcast %9 : vector<16x1xf32> to vector<16x32xf32>
    %18 = arith.subf %0, %17 : vector<16x32xf32>
    %19 = vector.broadcast %4 : vector<1x32xf32> to vector<16x32xf32>
    %20 = arith.mulf %19, %18 : vector<16x32xf32>
    %21 = math.sqrt %16 : vector<16x1xf32>
    %cst_8 = arith.constant 9.99999997E-7 : f32
    %22 = vector.broadcast %cst_8 : f32 to vector<16x1xf32>
    %23 = arith.addf %21, %22 : vector<16x1xf32>
    %24 = vector.broadcast %23 : vector<16x1xf32> to vector<16x32xf32>
    %25 = arith.divf %20, %24 : vector<16x32xf32>
    %26 = vector.broadcast %5 : vector<1x32xf32> to vector<16x32xf32>
    %27 = arith.addf %25, %26 : vector<16x32xf32>
    %c0_9 = arith.constant 0 : index
    %c0_10 = arith.constant 0 : index
    %28 = vector.load %arg4[%c0_9, %c0_10] : memref<328x128xf32, #tpu.memory_space<vmem>>, vector<32x96xf32>
    %cst_11 = arith.constant dense<0.000000e+00> : vector<16x96xf32>
    %29 = tpu.matmul %27, %28, %cst_11 {dimension_numbers = #tpu.dot_dimension_numbers<[1], [0], [0], [1], [0, 0, 1, 1], [], []>} : vector<16x32xf32>, vector<32x96xf32>, vector<16x96xf32> -> vector<16x96xf32>
    %c256 = arith.constant 256 : index
    %c0_12 = arith.constant 0 : index
    %30 = vector.load %arg4[%c256, %c0_12] : memref<328x128xf32, #tpu.memory_space<vmem>>, vector<1x96xf32>
    %31 = vector.broadcast %30 : vector<1x96xf32> to vector<16x96xf32>
    %32 = arith.addf %29, %31 : vector<16x96xf32>
    %33 = vector.extract_strided_slice %32 {offsets = [0, 0], sizes = [16, 32], strides = [1, 1]} : vector<16x96xf32> to vector<16x32xf32>
    %cst_13 = arith.constant 0.353553385 : f32
    %34 = vector.broadcast %cst_13 : f32 to vector<16x32xf32>
    %35 = arith.mulf %33, %34 : vector<16x32xf32>
    %36 = vector.extract_strided_slice %32 {offsets = [0, 32], sizes = [16, 32], strides = [1, 1]} : vector<16x96xf32> to vector<16x32xf32>
    %37 = vector.extract_strided_slice %32 {offsets = [0, 64], sizes = [16, 32], strides = [1, 1]} : vector<16x96xf32> to vector<16x32xf32>
    %c0_14 = arith.constant 0 : index
    %c0_15 = arith.constant 0 : index
    %38 = vector.load %arg2[%c0_14, %c0_15] : memref<16x16xf32, #tpu.memory_space<vmem>>, vector<16x16xf32>
    %c32 = arith.constant 32 : index
    %c0_16 = arith.constant 0 : index
    %39 = vector.load %arg4[%c32, %c0_16] : memref<328x128xf32, #tpu.memory_space<vmem>>, vector<32x32xf32>
    %c264 = arith.constant 264 : index
    %c0_17 = arith.constant 0 : index
    %40 = vector.load %arg4[%c264, %c0_17] : memref<328x128xf32, #tpu.memory_space<vmem>>, vector<1x32xf32>
    %41 = vector.extract_strided_slice %35 {offsets = [0, 0], sizes = [16, 8], strides = [1, 1]} : vector<16x32xf32> to vector<16x8xf32>
    %42 = vector.extract_strided_slice %36 {offsets = [0, 0], sizes = [16, 8], strides = [1, 1]} : vector<16x32xf32> to vector<16x8xf32>
    %cst_18 = arith.constant dense<0.000000e+00> : vector<16x16xf32>
    %43 = tpu.matmul %41, %42, %cst_18 {dimension_numbers = #tpu.dot_dimension_numbers<[1], [1], [0], [0], [0, 0, 1, 0], [], []>} : vector<16x8xf32>, vector<16x8xf32>, vector<16x16xf32> -> vector<16x16xf32>
    %44 = arith.addf %43, %38 : vector<16x16xf32>
    %cst_19 = arith.constant dense<0xFF800000> : vector<16xf32>
    %45 = vector.multi_reduction <maximumf>, %44, %cst_19 [1] : vector<16x16xf32> to vector<16xf32>
    %46 = vector.shape_cast %45 : vector<16xf32> to vector<16x1xf32>
    %47 = vector.broadcast %46 : vector<16x1xf32> to vector<16x16xf32>
    %48 = arith.subf %44, %47 : vector<16x16xf32>
    %49 = math.exp %48 : vector<16x16xf32>
    %cst_20 = arith.constant dense<0.000000e+00> : vector<16xf32>
    %50 = vector.multi_reduction <add>, %49, %cst_20 [1] : vector<16x16xf32> to vector<16xf32>
    %51 = vector.shape_cast %50 : vector<16xf32> to vector<16x1xf32>
    %52 = tpu.reciprocal %51 {approx = true} : vector<16x1xf32> -> vector<16x1xf32>
    %53 = vector.broadcast %52 : vector<16x1xf32> to vector<16x16xf32>
    %54 = arith.mulf %49, %53 : vector<16x16xf32>
    %55 = vector.extract_strided_slice %37 {offsets = [0, 0], sizes = [16, 8], strides = [1, 1]} : vector<16x32xf32> to vector<16x8xf32>
    %cst_21 = arith.constant dense<0.000000e+00> : vector<16x8xf32>
    %56 = tpu.matmul %54, %55, %cst_21 {dimension_numbers = #tpu.dot_dimension_numbers<[1], [0], [0], [1], [0, 0, 1, 1], [], []>} : vector<16x16xf32>, vector<16x8xf32>, vector<16x8xf32> -> vector<16x8xf32>
    %c0_22 = arith.constant 0 : index
    %c0_23 = arith.constant 0 : index
    %57 = vector.load %arg6[%c0_22, %c0_23] : memref<16x32xf32, #tpu.memory_space<vmem>>, vector<16x8xf32>
    tpu.vector_store %arg6[%c0_22, %c0_23], %56 {strides = array<i32>} : memref<16x32xf32, #tpu.memory_space<vmem>>, vector<16x8xf32>,
    %58 = vector.extract_strided_slice %35 {offsets = [0, 8], sizes = [16, 8], strides = [1, 1]} : vector<16x32xf32> to vector<16x8xf32>
    %59 = vector.extract_strided_slice %36 {offsets = [0, 8], sizes = [16, 8], strides = [1, 1]} : vector<16x32xf32> to vector<16x8xf32>
    %cst_24 = arith.constant dense<0.000000e+00> : vector<16x16xf32>
    %60 = tpu.matmul %58, %59, %cst_24 {dimension_numbers = #tpu.dot_dimension_numbers<[1], [1], [0], [0], [0, 0, 1, 0], [], []>} : vector<16x8xf32>, vector<16x8xf32>, vector<16x16xf32> -> vector<16x16xf32>
    %61 = arith.addf %60, %38 : vector<16x16xf32>
    %cst_25 = arith.constant dense<0xFF800000> : vector<16xf32>
    %62 = vector.multi_reduction <maximumf>, %61, %cst_25 [1] : vector<16x16xf32> to vector<16xf32>
    %63 = vector.shape_cast %62 : vector<16xf32> to vector<16x1xf32>
    %64 = vector.broadcast %63 : vector<16x1xf32> to vector<16x16xf32>
    %65 = arith.subf %61, %64 : vector<16x16xf32>
    %66 = math.exp %65 : vector<16x16xf32>
    %cst_26 = arith.constant dense<0.000000e+00> : vector<16xf32>
    %67 = vector.multi_reduction <add>, %66, %cst_26 [1] : vector<16x16xf32> to vector<16xf32>
    %68 = vector.shape_cast %67 : vector<16xf32> to vector<16x1xf32>
    %69 = tpu.reciprocal %68 {approx = true} : vector<16x1xf32> -> vector<16x1xf32>
    %70 = vector.broadcast %69 : vector<16x1xf32> to vector<16x16xf32>
    %71 = arith.mulf %66, %70 : vector<16x16xf32>
    %72 = vector.extract_strided_slice %37 {offsets = [0, 8], sizes = [16, 8], strides = [1, 1]} : vector<16x32xf32> to vector<16x8xf32>
    %cst_27 = arith.constant dense<0.000000e+00> : vector<16x8xf32>
    %73 = tpu.matmul %71, %72, %cst_27 {dimension_numbers = #tpu.dot_dimension_numbers<[1], [0], [0], [1], [0, 0, 1, 1], [], []>} : vector<16x16xf32>, vector<16x8xf32>, vector<16x8xf32> -> vector<16x8xf32>
    %c0_28 = arith.constant 0 : index
    %c8 = arith.constant 8 : index
    %74 = vector.load %arg6[%c0_28, %c8] : memref<16x32xf32, #tpu.memory_space<vmem>>, vector<16x8xf32>
    tpu.vector_store %arg6[%c0_28, %c8], %73 {strides = array<i32>} : memref<16x32xf32, #tpu.memory_space<vmem>>, vector<16x8xf32>,
    %75 = vector.extract_strided_slice %35 {offsets = [0, 16], sizes = [16, 8], strides = [1, 1]} : vector<16x32xf32> to vector<16x8xf32>
    %76 = vector.extract_strided_slice %36 {offsets = [0, 16], sizes = [16, 8], strides = [1, 1]} : vector<16x32xf32> to vector<16x8xf32>
    %cst_29 = arith.constant dense<0.000000e+00> : vector<16x16xf32>
    %77 = tpu.matmul %75, %76, %cst_29 {dimension_numbers = #tpu.dot_dimension_numbers<[1], [1], [0], [0], [0, 0, 1, 0], [], []>} : vector<16x8xf32>, vector<16x8xf32>, vector<16x16xf32> -> vector<16x16xf32>
    %78 = arith.addf %77, %38 : vector<16x16xf32>
    %cst_30 = arith.constant dense<0xFF800000> : vector<16xf32>
    %79 = vector.multi_reduction <maximumf>, %78, %cst_30 [1] : vector<16x16xf32> to vector<16xf32>
    %80 = vector.shape_cast %79 : vector<16xf32> to vector<16x1xf32>
    %81 = vector.broadcast %80 : vector<16x1xf32> to vector<16x16xf32>
    %82 = arith.subf %78, %81 : vector<16x16xf32>
    %83 = math.exp %82 : vector<16x16xf32>
    %cst_31 = arith.constant dense<0.000000e+00> : vector<16xf32>
    %84 = vector.multi_reduction <add>, %83, %cst_31 [1] : vector<16x16xf32> to vector<16xf32>
    %85 = vector.shape_cast %84 : vector<16xf32> to vector<16x1xf32>
    %86 = tpu.reciprocal %85 {approx = true} : vector<16x1xf32> -> vector<16x1xf32>
    %87 = vector.broadcast %86 : vector<16x1xf32> to vector<16x16xf32>
    %88 = arith.mulf %83, %87 : vector<16x16xf32>
    %89 = vector.extract_strided_slice %37 {offsets = [0, 16], sizes = [16, 8], strides = [1, 1]} : vector<16x32xf32> to vector<16x8xf32>
    %cst_32 = arith.constant dense<0.000000e+00> : vector<16x8xf32>
    %90 = tpu.matmul %88, %89, %cst_32 {dimension_numbers = #tpu.dot_dimension_numbers<[1], [0], [0], [1], [0, 0, 1, 1], [], []>} : vector<16x16xf32>, vector<16x8xf32>, vector<16x8xf32> -> vector<16x8xf32>
    %c0_33 = arith.constant 0 : index
    %c16 = arith.constant 16 : index
    %91 = vector.load %arg6[%c0_33, %c16] : memref<16x32xf32, #tpu.memory_space<vmem>>, vector<16x8xf32>
    tpu.vector_store %arg6[%c0_33, %c16], %90 {strides = array<i32>} : memref<16x32xf32, #tpu.memory_space<vmem>>, vector<16x8xf32>,
    %92 = vector.extract_strided_slice %35 {offsets = [0, 24], sizes = [16, 8], strides = [1, 1]} : vector<16x32xf32> to vector<16x8xf32>
    %93 = vector.extract_strided_slice %36 {offsets = [0, 24], sizes = [16, 8], strides = [1, 1]} : vector<16x32xf32> to vector<16x8xf32>
    %cst_34 = arith.constant dense<0.000000e+00> : vector<16x16xf32>
    %94 = tpu.matmul %92, %93, %cst_34 {dimension_numbers = #tpu.dot_dimension_numbers<[1], [1], [0], [0], [0, 0, 1, 0], [], []>} : vector<16x8xf32>, vector<16x8xf32>, vector<16x16xf32> -> vector<16x16xf32>
    %95 = arith.addf %94, %38 : vector<16x16xf32>
    %cst_35 = arith.constant dense<0xFF800000> : vector<16xf32>
    %96 = vector.multi_reduction <maximumf>, %95, %cst_35 [1] : vector<16x16xf32> to vector<16xf32>
    %97 = vector.shape_cast %96 : vector<16xf32> to vector<16x1xf32>
    %98 = vector.broadcast %97 : vector<16x1xf32> to vector<16x16xf32>
    %99 = arith.subf %95, %98 : vector<16x16xf32>
    %100 = math.exp %99 : vector<16x16xf32>
    %cst_36 = arith.constant dense<0.000000e+00> : vector<16xf32>
    %101 = vector.multi_reduction <add>, %100, %cst_36 [1] : vector<16x16xf32> to vector<16xf32>
    %102 = vector.shape_cast %101 : vector<16xf32> to vector<16x1xf32>
    %103 = tpu.reciprocal %102 {approx = true} : vector<16x1xf32> -> vector<16x1xf32>
    %104 = vector.broadcast %103 : vector<16x1xf32> to vector<16x16xf32>
    %105 = arith.mulf %100, %104 : vector<16x16xf32>
    %106 = vector.extract_strided_slice %37 {offsets = [0, 24], sizes = [16, 8], strides = [1, 1]} : vector<16x32xf32> to vector<16x8xf32>
    %cst_37 = arith.constant dense<0.000000e+00> : vector<16x8xf32>
    %107 = tpu.matmul %105, %106, %cst_37 {dimension_numbers = #tpu.dot_dimension_numbers<[1], [0], [0], [1], [0, 0, 1, 1], [], []>} : vector<16x16xf32>, vector<16x8xf32>, vector<16x8xf32> -> vector<16x8xf32>
    %c0_38 = arith.constant 0 : index
    %c24 = arith.constant 24 : index
    %108 = vector.load %arg6[%c0_38, %c24] : memref<16x32xf32, #tpu.memory_space<vmem>>, vector<16x8xf32>
    tpu.vector_store %arg6[%c0_38, %c24], %107 {strides = array<i32>} : memref<16x32xf32, #tpu.memory_space<vmem>>, vector<16x8xf32>,
    %c0_39 = arith.constant 0 : index
    %c0_40 = arith.constant 0 : index
    %109 = vector.load %arg6[%c0_39, %c0_40] : memref<16x32xf32, #tpu.memory_space<vmem>>, vector<16x32xf32>
    %cst_41 = arith.constant dense<0.000000e+00> : vector<16x32xf32>
    %110 = tpu.matmul %109, %39, %cst_41 {dimension_numbers = #tpu.dot_dimension_numbers<[1], [0], [0], [1], [0, 0, 1, 1], [], []>} : vector<16x32xf32>, vector<32x32xf32>, vector<16x32xf32> -> vector<16x32xf32>
    %111 = vector.broadcast %40 : vector<1x32xf32> to vector<16x32xf32>
    %112 = arith.addf %110, %111 : vector<16x32xf32>
    %113 = arith.addf %0, %112 : vector<16x32xf32>
    %114 = vector.extract_strided_slice %2 {offsets = [1, 0], sizes = [1, 32], strides = [1, 1]} : vector<3x32xf32> to vector<1x32xf32>
    %115 = vector.extract_strided_slice %3 {offsets = [1, 0], sizes = [1, 32], strides = [1, 1]} : vector<3x32xf32> to vector<1x32xf32>
    %cst_42 = arith.constant dense<0.000000e+00> : vector<16xf32>
    %116 = vector.multi_reduction <add>, %113, %cst_42 [1] : vector<16x32xf32> to vector<16xf32>
    %117 = vector.shape_cast %116 : vector<16xf32> to vector<16x1xf32>
    %cst_43 = arith.constant 3.200000e+01 : f32
    %118 = vector.broadcast %cst_43 : f32 to vector<16x1xf32>
    %119 = arith.divf %117, %118 : vector<16x1xf32>
    %120 = vector.broadcast %119 : vector<16x1xf32> to vector<16x32xf32>
    %121 = arith.subf %113, %120 : vector<16x32xf32>
    %122 = arith.mulf %121, %121 : vector<16x32xf32>
    %cst_44 = arith.constant dense<0.000000e+00> : vector<16xf32>
    %123 = vector.multi_reduction <add>, %122, %cst_44 [1] : vector<16x32xf32> to vector<16xf32>
    %124 = vector.shape_cast %123 : vector<16xf32> to vector<16x1xf32>
    %cst_45 = arith.constant 3.100000e+01 : f32
    %125 = vector.broadcast %cst_45 : f32 to vector<16x1xf32>
    %126 = arith.divf %124, %125 : vector<16x1xf32>
    %127 = vector.broadcast %119 : vector<16x1xf32> to vector<16x32xf32>
    %128 = arith.subf %113, %127 : vector<16x32xf32>
    %129 = vector.broadcast %114 : vector<1x32xf32> to vector<16x32xf32>
    %130 = arith.mulf %129, %128 : vector<16x32xf32>
    %131 = math.sqrt %126 : vector<16x1xf32>
    %cst_46 = arith.constant 9.99999997E-7 : f32
    %132 = vector.broadcast %cst_46 : f32 to vector<16x1xf32>
    %133 = arith.addf %131, %132 : vector<16x1xf32>
    %134 = vector.broadcast %133 : vector<16x1xf32> to vector<16x32xf32>
    %135 = arith.divf %130, %134 : vector<16x32xf32>
    %136 = vector.broadcast %115 : vector<1x32xf32> to vector<16x32xf32>
    %137 = arith.addf %135, %136 : vector<16x32xf32>
    %c64 = arith.constant 64 : index
    %c0_47 = arith.constant 0 : index
    %138 = vector.load %arg4[%c64, %c0_47] : memref<328x128xf32, #tpu.memory_space<vmem>>, vector<32x32xf32>
    %cst_48 = arith.constant dense<0.000000e+00> : vector<16x32xf32>
    %139 = tpu.matmul %137, %138, %cst_48 {dimension_numbers = #tpu.dot_dimension_numbers<[1], [0], [0], [1], [0, 0, 1, 1], [], []>} : vector<16x32xf32>, vector<32x32xf32>, vector<16x32xf32> -> vector<16x32xf32>
    %c272 = arith.constant 272 : index
    %c0_49 = arith.constant 0 : index
    %140 = vector.load %arg4[%c272, %c0_49] : memref<328x128xf32, #tpu.memory_space<vmem>>, vector<1x32xf32>
    %141 = vector.broadcast %140 : vector<1x32xf32> to vector<16x32xf32>
    %142 = arith.addf %139, %141 : vector<16x32xf32>
    %cst_50 = arith.constant 0.353553385 : f32
    %143 = vector.broadcast %cst_50 : f32 to vector<16x32xf32>
    %144 = arith.mulf %142, %143 : vector<16x32xf32>
    %c96 = arith.constant 96 : index
    %c0_51 = arith.constant 0 : index
    %145 = vector.load %arg4[%c96, %c0_51] : memref<328x128xf32, #tpu.memory_space<vmem>>, vector<32x64xf32>
    %cst_52 = arith.constant dense<0.000000e+00> : vector<16x64xf32>
    %146 = tpu.matmul %1, %145, %cst_52 {dimension_numbers = #tpu.dot_dimension_numbers<[1], [0], [0], [1], [0, 0, 1, 1], [], []>} : vector<16x32xf32>, vector<32x64xf32>, vector<16x64xf32> -> vector<16x64xf32>
    %c280 = arith.constant 280 : index
    %c0_53 = arith.constant 0 : index
    %147 = vector.load %arg4[%c280, %c0_53] : memref<328x128xf32, #tpu.memory_space<vmem>>, vector<1x64xf32>
    %148 = vector.broadcast %147 : vector<1x64xf32> to vector<16x64xf32>
    %149 = arith.addf %146, %148 : vector<16x64xf32>
    %150 = vector.extract_strided_slice %149 {offsets = [0, 0], sizes = [16, 32], strides = [1, 1]} : vector<16x64xf32> to vector<16x32xf32>
    %151 = vector.extract_strided_slice %149 {offsets = [0, 32], sizes = [16, 32], strides = [1, 1]} : vector<16x64xf32> to vector<16x32xf32>
    %c0_54 = arith.constant 0 : index
    %c0_55 = arith.constant 0 : index
    %152 = vector.load %arg3[%c0_54, %c0_55] : memref<16x16xf32, #tpu.memory_space<vmem>>, vector<16x16xf32>
    %c128 = arith.constant 128 : index
    %c0_56 = arith.constant 0 : index
    %153 = vector.load %arg4[%c128, %c0_56] : memref<328x128xf32, #tpu.memory_space<vmem>>, vector<32x32xf32>
    %c288 = arith.constant 288 : index
    %c0_57 = arith.constant 0 : index
    %154 = vector.load %arg4[%c288, %c0_57] : memref<328x128xf32, #tpu.memory_space<vmem>>, vector<1x32xf32>
    %155 = vector.extract_strided_slice %144 {offsets = [0, 0], sizes = [16, 8], strides = [1, 1]} : vector<16x32xf32> to vector<16x8xf32>
    %156 = vector.extract_strided_slice %150 {offsets = [0, 0], sizes = [16, 8], strides = [1, 1]} : vector<16x32xf32> to vector<16x8xf32>
    %cst_58 = arith.constant dense<0.000000e+00> : vector<16x16xf32>
    %157 = tpu.matmul %155, %156, %cst_58 {dimension_numbers = #tpu.dot_dimension_numbers<[1], [1], [0], [0], [0, 0, 1, 0], [], []>} : vector<16x8xf32>, vector<16x8xf32>, vector<16x16xf32> -> vector<16x16xf32>
    %158 = arith.addf %157, %152 : vector<16x16xf32>
    %cst_59 = arith.constant dense<0xFF800000> : vector<16xf32>
    %159 = vector.multi_reduction <maximumf>, %158, %cst_59 [1] : vector<16x16xf32> to vector<16xf32>
    %160 = vector.shape_cast %159 : vector<16xf32> to vector<16x1xf32>
    %161 = vector.broadcast %160 : vector<16x1xf32> to vector<16x16xf32>
    %162 = arith.subf %158, %161 : vector<16x16xf32>
    %163 = math.exp %162 : vector<16x16xf32>
    %cst_60 = arith.constant dense<0.000000e+00> : vector<16xf32>
    %164 = vector.multi_reduction <add>, %163, %cst_60 [1] : vector<16x16xf32> to vector<16xf32>
    %165 = vector.shape_cast %164 : vector<16xf32> to vector<16x1xf32>
    %166 = tpu.reciprocal %165 {approx = true} : vector<16x1xf32> -> vector<16x1xf32>
    %167 = vector.broadcast %166 : vector<16x1xf32> to vector<16x16xf32>
    %168 = arith.mulf %163, %167 : vector<16x16xf32>
    %169 = vector.extract_strided_slice %151 {offsets = [0, 0], sizes = [16, 8], strides = [1, 1]} : vector<16x32xf32> to vector<16x8xf32>
    %cst_61 = arith.constant dense<0.000000e+00> : vector<16x8xf32>
    %170 = tpu.matmul %168, %169, %cst_61 {dimension_numbers = #tpu.dot_dimension_numbers<[1], [0], [0], [1], [0, 0, 1, 1], [], []>} : vector<16x16xf32>, vector<16x8xf32>, vector<16x8xf32> -> vector<16x8xf32>
    %c0_62 = arith.constant 0 : index
    %c0_63 = arith.constant 0 : index
    %171 = vector.load %arg6[%c0_62, %c0_63] : memref<16x32xf32, #tpu.memory_space<vmem>>, vector<16x8xf32>
    tpu.vector_store %arg6[%c0_62, %c0_63], %170 {strides = array<i32>} : memref<16x32xf32, #tpu.memory_space<vmem>>, vector<16x8xf32>,
    %172 = vector.extract_strided_slice %144 {offsets = [0, 8], sizes = [16, 8], strides = [1, 1]} : vector<16x32xf32> to vector<16x8xf32>
    %173 = vector.extract_strided_slice %150 {offsets = [0, 8], sizes = [16, 8], strides = [1, 1]} : vector<16x32xf32> to vector<16x8xf32>
    %cst_64 = arith.constant dense<0.000000e+00> : vector<16x16xf32>
    %174 = tpu.matmul %172, %173, %cst_64 {dimension_numbers = #tpu.dot_dimension_numbers<[1], [1], [0], [0], [0, 0, 1, 0], [], []>} : vector<16x8xf32>, vector<16x8xf32>, vector<16x16xf32> -> vector<16x16xf32>
    %175 = arith.addf %174, %152 : vector<16x16xf32>
    %cst_65 = arith.constant dense<0xFF800000> : vector<16xf32>
    %176 = vector.multi_reduction <maximumf>, %175, %cst_65 [1] : vector<16x16xf32> to vector<16xf32>
    %177 = vector.shape_cast %176 : vector<16xf32> to vector<16x1xf32>
    %178 = vector.broadcast %177 : vector<16x1xf32> to vector<16x16xf32>
    %179 = arith.subf %175, %178 : vector<16x16xf32>
    %180 = math.exp %179 : vector<16x16xf32>
    %cst_66 = arith.constant dense<0.000000e+00> : vector<16xf32>
    %181 = vector.multi_reduction <add>, %180, %cst_66 [1] : vector<16x16xf32> to vector<16xf32>
    %182 = vector.shape_cast %181 : vector<16xf32> to vector<16x1xf32>
    %183 = tpu.reciprocal %182 {approx = true} : vector<16x1xf32> -> vector<16x1xf32>
    %184 = vector.broadcast %183 : vector<16x1xf32> to vector<16x16xf32>
    %185 = arith.mulf %180, %184 : vector<16x16xf32>
    %186 = vector.extract_strided_slice %151 {offsets = [0, 8], sizes = [16, 8], strides = [1, 1]} : vector<16x32xf32> to vector<16x8xf32>
    %cst_67 = arith.constant dense<0.000000e+00> : vector<16x8xf32>
    %187 = tpu.matmul %185, %186, %cst_67 {dimension_numbers = #tpu.dot_dimension_numbers<[1], [0], [0], [1], [0, 0, 1, 1], [], []>} : vector<16x16xf32>, vector<16x8xf32>, vector<16x8xf32> -> vector<16x8xf32>
    %c0_68 = arith.constant 0 : index
    %c8_69 = arith.constant 8 : index
    %188 = vector.load %arg6[%c0_68, %c8_69] : memref<16x32xf32, #tpu.memory_space<vmem>>, vector<16x8xf32>
    tpu.vector_store %arg6[%c0_68, %c8_69], %187 {strides = array<i32>} : memref<16x32xf32, #tpu.memory_space<vmem>>, vector<16x8xf32>,
    %189 = vector.extract_strided_slice %144 {offsets = [0, 16], sizes = [16, 8], strides = [1, 1]} : vector<16x32xf32> to vector<16x8xf32>
    %190 = vector.extract_strided_slice %150 {offsets = [0, 16], sizes = [16, 8], strides = [1, 1]} : vector<16x32xf32> to vector<16x8xf32>
    %cst_70 = arith.constant dense<0.000000e+00> : vector<16x16xf32>
    %191 = tpu.matmul %189, %190, %cst_70 {dimension_numbers = #tpu.dot_dimension_numbers<[1], [1], [0], [0], [0, 0, 1, 0], [], []>} : vector<16x8xf32>, vector<16x8xf32>, vector<16x16xf32> -> vector<16x16xf32>
    %192 = arith.addf %191, %152 : vector<16x16xf32>
    %cst_71 = arith.constant dense<0xFF800000> : vector<16xf32>
    %193 = vector.multi_reduction <maximumf>, %192, %cst_71 [1] : vector<16x16xf32> to vector<16xf32>
    %194 = vector.shape_cast %193 : vector<16xf32> to vector<16x1xf32>
    %195 = vector.broadcast %194 : vector<16x1xf32> to vector<16x16xf32>
    %196 = arith.subf %192, %195 : vector<16x16xf32>
    %197 = math.exp %196 : vector<16x16xf32>
    %cst_72 = arith.constant dense<0.000000e+00> : vector<16xf32>
    %198 = vector.multi_reduction <add>, %197, %cst_72 [1] : vector<16x16xf32> to vector<16xf32>
    %199 = vector.shape_cast %198 : vector<16xf32> to vector<16x1xf32>
    %200 = tpu.reciprocal %199 {approx = true} : vector<16x1xf32> -> vector<16x1xf32>
    %201 = vector.broadcast %200 : vector<16x1xf32> to vector<16x16xf32>
    %202 = arith.mulf %197, %201 : vector<16x16xf32>
    %203 = vector.extract_strided_slice %151 {offsets = [0, 16], sizes = [16, 8], strides = [1, 1]} : vector<16x32xf32> to vector<16x8xf32>
    %cst_73 = arith.constant dense<0.000000e+00> : vector<16x8xf32>
    %204 = tpu.matmul %202, %203, %cst_73 {dimension_numbers = #tpu.dot_dimension_numbers<[1], [0], [0], [1], [0, 0, 1, 1], [], []>} : vector<16x16xf32>, vector<16x8xf32>, vector<16x8xf32> -> vector<16x8xf32>
    %c0_74 = arith.constant 0 : index
    %c16_75 = arith.constant 16 : index
    %205 = vector.load %arg6[%c0_74, %c16_75] : memref<16x32xf32, #tpu.memory_space<vmem>>, vector<16x8xf32>
    tpu.vector_store %arg6[%c0_74, %c16_75], %204 {strides = array<i32>} : memref<16x32xf32, #tpu.memory_space<vmem>>, vector<16x8xf32>,
    %206 = vector.extract_strided_slice %144 {offsets = [0, 24], sizes = [16, 8], strides = [1, 1]} : vector<16x32xf32> to vector<16x8xf32>
    %207 = vector.extract_strided_slice %150 {offsets = [0, 24], sizes = [16, 8], strides = [1, 1]} : vector<16x32xf32> to vector<16x8xf32>
    %cst_76 = arith.constant dense<0.000000e+00> : vector<16x16xf32>
    %208 = tpu.matmul %206, %207, %cst_76 {dimension_numbers = #tpu.dot_dimension_numbers<[1], [1], [0], [0], [0, 0, 1, 0], [], []>} : vector<16x8xf32>, vector<16x8xf32>, vector<16x16xf32> -> vector<16x16xf32>
    %209 = arith.addf %208, %152 : vector<16x16xf32>
    %cst_77 = arith.constant dense<0xFF800000> : vector<16xf32>
    %210 = vector.multi_reduction <maximumf>, %209, %cst_77 [1] : vector<16x16xf32> to vector<16xf32>
    %211 = vector.shape_cast %210 : vector<16xf32> to vector<16x1xf32>
    %212 = vector.broadcast %211 : vector<16x1xf32> to vector<16x16xf32>
    %213 = arith.subf %209, %212 : vector<16x16xf32>
    %214 = math.exp %213 : vector<16x16xf32>
    %cst_78 = arith.constant dense<0.000000e+00> : vector<16xf32>
    %215 = vector.multi_reduction <add>, %214, %cst_78 [1] : vector<16x16xf32> to vector<16xf32>
    %216 = vector.shape_cast %215 : vector<16xf32> to vector<16x1xf32>
    %217 = tpu.reciprocal %216 {approx = true} : vector<16x1xf32> -> vector<16x1xf32>
    %218 = vector.broadcast %217 : vector<16x1xf32> to vector<16x16xf32>
    %219 = arith.mulf %214, %218 : vector<16x16xf32>
    %220 = vector.extract_strided_slice %151 {offsets = [0, 24], sizes = [16, 8], strides = [1, 1]} : vector<16x32xf32> to vector<16x8xf32>
    %cst_79 = arith.constant dense<0.000000e+00> : vector<16x8xf32>
    %221 = tpu.matmul %219, %220, %cst_79 {dimension_numbers = #tpu.dot_dimension_numbers<[1], [0], [0], [1], [0, 0, 1, 1], [], []>} : vector<16x16xf32>, vector<16x8xf32>, vector<16x8xf32> -> vector<16x8xf32>
    %c0_80 = arith.constant 0 : index
    %c24_81 = arith.constant 24 : index
    %222 = vector.load %arg6[%c0_80, %c24_81] : memref<16x32xf32, #tpu.memory_space<vmem>>, vector<16x8xf32>
    tpu.vector_store %arg6[%c0_80, %c24_81], %221 {strides = array<i32>} : memref<16x32xf32, #tpu.memory_space<vmem>>, vector<16x8xf32>,
    %c0_82 = arith.constant 0 : index
    %c0_83 = arith.constant 0 : index
    %223 = vector.load %arg6[%c0_82, %c0_83] : memref<16x32xf32, #tpu.memory_space<vmem>>, vector<16x32xf32>
    %cst_84 = arith.constant dense<0.000000e+00> : vector<16x32xf32>
    %224 = tpu.matmul %223, %153, %cst_84 {dimension_numbers = #tpu.dot_dimension_numbers<[1], [0], [0], [1], [0, 0, 1, 1], [], []>} : vector<16x32xf32>, vector<32x32xf32>, vector<16x32xf32> -> vector<16x32xf32>
    %225 = vector.broadcast %154 : vector<1x32xf32> to vector<16x32xf32>
    %226 = arith.addf %224, %225 : vector<16x32xf32>
    %227 = arith.addf %113, %226 : vector<16x32xf32>
    %228 = vector.extract_strided_slice %2 {offsets = [2, 0], sizes = [1, 32], strides = [1, 1]} : vector<3x32xf32> to vector<1x32xf32>
    %229 = vector.extract_strided_slice %3 {offsets = [2, 0], sizes = [1, 32], strides = [1, 1]} : vector<3x32xf32> to vector<1x32xf32>
    %cst_85 = arith.constant dense<0.000000e+00> : vector<16xf32>
    %230 = vector.multi_reduction <add>, %227, %cst_85 [1] : vector<16x32xf32> to vector<16xf32>
    %231 = vector.shape_cast %230 : vector<16xf32> to vector<16x1xf32>
    %cst_86 = arith.constant 3.200000e+01 : f32
    %232 = vector.broadcast %cst_86 : f32 to vector<16x1xf32>
    %233 = arith.divf %231, %232 : vector<16x1xf32>
    %234 = vector.broadcast %233 : vector<16x1xf32> to vector<16x32xf32>
    %235 = arith.subf %227, %234 : vector<16x32xf32>
    %236 = arith.mulf %235, %235 : vector<16x32xf32>
    %cst_87 = arith.constant dense<0.000000e+00> : vector<16xf32>
    %237 = vector.multi_reduction <add>, %236, %cst_87 [1] : vector<16x32xf32> to vector<16xf32>
    %238 = vector.shape_cast %237 : vector<16xf32> to vector<16x1xf32>
    %cst_88 = arith.constant 3.100000e+01 : f32
    %239 = vector.broadcast %cst_88 : f32 to vector<16x1xf32>
    %240 = arith.divf %238, %239 : vector<16x1xf32>
    %241 = vector.broadcast %233 : vector<16x1xf32> to vector<16x32xf32>
    %242 = arith.subf %227, %241 : vector<16x32xf32>
    %243 = vector.broadcast %228 : vector<1x32xf32> to vector<16x32xf32>
    %244 = arith.mulf %243, %242 : vector<16x32xf32>
    %245 = math.sqrt %240 : vector<16x1xf32>
    %cst_89 = arith.constant 9.99999997E-7 : f32
    %246 = vector.broadcast %cst_89 : f32 to vector<16x1xf32>
    %247 = arith.addf %245, %246 : vector<16x1xf32>
    %248 = vector.broadcast %247 : vector<16x1xf32> to vector<16x32xf32>
    %249 = arith.divf %244, %248 : vector<16x32xf32>
    %250 = vector.broadcast %229 : vector<1x32xf32> to vector<16x32xf32>
    %251 = arith.addf %249, %250 : vector<16x32xf32>
    %c160 = arith.constant 160 : index
    %c0_90 = arith.constant 0 : index
    %252 = vector.load %arg4[%c160, %c0_90] : memref<328x128xf32, #tpu.memory_space<vmem>>, vector<32x64xf32>
    %cst_91 = arith.constant dense<0.000000e+00> : vector<16x64xf32>
    %253 = tpu.matmul %251, %252, %cst_91 {dimension_numbers = #tpu.dot_dimension_numbers<[1], [0], [0], [1], [0, 0, 1, 1], [], []>} : vector<16x32xf32>, vector<32x64xf32>, vector<16x64xf32> -> vector<16x64xf32>
    %c296 = arith.constant 296 : index
    %c0_92 = arith.constant 0 : index
    %254 = vector.load %arg4[%c296, %c0_92] : memref<328x128xf32, #tpu.memory_space<vmem>>, vector<1x64xf32>
    %255 = vector.broadcast %254 : vector<1x64xf32> to vector<16x64xf32>
    %256 = arith.addf %253, %255 : vector<16x64xf32>
    %cst_93 = arith.constant 0.000000e+00 : f32
    %257 = vector.broadcast %cst_93 : f32 to vector<16x64xf32>
    %258 = arith.maximumf %256, %257 : vector<16x64xf32>
    %c192 = arith.constant 192 : index
    %c0_94 = arith.constant 0 : index
    %259 = vector.load %arg4[%c192, %c0_94] : memref<328x128xf32, #tpu.memory_space<vmem>>, vector<64x32xf32>
    %cst_95 = arith.constant dense<0.000000e+00> : vector<16x32xf32>
    %260 = tpu.matmul %258, %259, %cst_95 {dimension_numbers = #tpu.dot_dimension_numbers<[1], [0], [0], [1], [0, 0, 1, 1], [], []>} : vector<16x64xf32>, vector<64x32xf32>, vector<16x32xf32> -> vector<16x32xf32>
    %261 = arith.addf %227, %260 : vector<16x32xf32>
    %c304 = arith.constant 304 : index
    %c0_96 = arith.constant 0 : index
    %262 = vector.load %arg4[%c304, %c0_96] : memref<328x128xf32, #tpu.memory_space<vmem>>, vector<1x32xf32>
    %263 = vector.broadcast %262 : vector<1x32xf32> to vector<16x32xf32>
    %264 = arith.addf %261, %263 : vector<16x32xf32>
    %c0_97 = arith.constant 0 : index
    %c0_98 = arith.constant 0 : index
    %265 = vector.load %arg5[%c0_97, %c0_98] : memref<16x32xf32, #tpu.memory_space<vmem>>, vector<16x32xf32>
    tpu.vector_store %arg5[%c0_97, %c0_98], %264 {strides = array<i32>} : memref<16x32xf32, #tpu.memory_space<vmem>>, vector<16x32xf32>,
    return
  }
}

</mosaic_0001>

<llo_original>
// kernel: decoder_layer.1
$region0: #{decoder_layer.1}
  #allocation0 [shape = 'u32[]', space=smem, size = 0x4, offset = 0x4, fixed_abs, tag = 'smem constant byte address 0x4 - core index']
  #allocation1 [shape = 'u32[144,128]{1,0:T(1,128)}', space=vmem, size = 0x12000, scoped, tag = 'internal scratch']
  #allocation2 [shape = 'f32[16,32]{1,0:T(8,128)}', space=vmem, size = 0x2000, scoped, tag = 'scratch operand']
  %s0 = inlined_call_operand.vmem [shape: f32[16,32], index: 0, kind: input, shape index: {}]
  %s1 = inlined_call_operand.vmem [shape: f32[16,32], index: 1, kind: input, shape index: {}]
  %s2 = inlined_call_operand.vmem [shape: f32[16,16], index: 2, kind: input, shape index: {}]
  %s3 = inlined_call_operand.vmem [shape: f32[16,16], index: 3, kind: input, shape index: {}]
  %s4 = inlined_call_operand.vmem [shape: f32[328,128], index: 4, kind: input, shape index: {}]
  %s5 = inlined_call_operand.hbm [shape: f32[16,32], index: 5, kind: output, shape index: {}]
  %s6 = sld [smem:[#allocation0]]
  $region30: #{decoder_layer.1} parent=0
    _
  %s8 = ssub.s32 1, %s6
  %s9 = scalar_select 0, %s8, %s6
  $region1: #{decoder_layer.1} parent=0
    #allocation3 [shape = 'u8[8192]{0}', space=vmem, size = 0x2000, scoped, tag = 'output window, operand 0, single buffered']
    #allocation4 [shape = 's32[1]{0}', space=sflag, size = 0x4, scoped, tag = 'scoped memory for decoder_layer.1']
    %10 = vsyncpa [#allocation4], 0
    // Predicated region
    $region2: #{decoder_layer.1} parent=1 // pred_check
      _
    $region3: #{decoder_layer.1} parent=1 // pred_check_branch
      %12 = sbr.rel (0) target = $region5
    $region4: #{decoder_layer.1} parent=1 // pred_region
      _
    $region5: #{decoder_layer.1} parent=1 // pred_fallthru
      _
    // Predicated region
    $region6: #{decoder_layer.1} parent=1 // pred_check
      _
    $region7: #{decoder_layer.1} parent=1 // pred_check_branch
      %14 = sbr.rel (0) target = $region9
    $region8: #{decoder_layer.1} parent=1 // pred_region
      _
    $region9: #{decoder_layer.1} parent=1 // pred_fallthru
      _
    // Predicated region
    $region10: #{decoder_layer.1} parent=1 // pred_check
      _
    $region11: #{decoder_layer.1} parent=1 // pred_check_branch
      %16 = sbr.rel (0) target = $region13
    $region12: #{decoder_layer.1} parent=1 // pred_region
      _
    $region13: #{decoder_layer.1} parent=1 // pred_fallthru
      _
    // Predicated region
    $region14: #{decoder_layer.1} parent=1 // pred_check
      _
    $region15: #{decoder_layer.1} parent=1 // pred_check_branch
      %18 = sbr.rel (0) target = $region17
    $region16: #{decoder_layer.1} parent=1 // pred_region
      _
    $region17: #{decoder_layer.1} parent=1 // pred_fallthru
      _
    // Predicated region
    $region18: #{decoder_layer.1} parent=1 // pred_check
      _
    $region19: #{decoder_layer.1} parent=1 // pred_check_branch
      %20 = sbr.rel (0) target = $region21
    $region20: #{decoder_layer.1} parent=1 // pred_region
      _
    $region21: #{decoder_layer.1} parent=1 // pred_fallthru
      _
    %v21 = vld [vmem:[%s0] sm:$0xff]
    %v22 = vld [vmem:[%s0 + $0x8] sm:$0xff]
    %v23 = vld [vmem:[%s1] sm:$0xff]
    %v24 = vld [vmem:[%s1 + $0x8] sm:$0xff]
    %v25 = vld [vmem:[%s4 + $0x138] sm:$0x7]
    %v26 = vld [vmem:[%s4 + $0x140] sm:$0x7]
    %vm27 = vcmask 261120
    %v28 = vsel %vm27, %v21, 0.0
    %29 = vadd.xlane.f32.xlu0 %v28
    %v30 = vpop.xlane.xlu0 %29
    %v31 = vsel %vm27, %v22, 0.0
    %32 = vadd.xlane.f32.xlu0 %v31
    %v33 = vpop.xlane.xlu0 %32
    %v34 = vrcp.pop 32.0
    %v35 = vmul.f32 %v30, %v34
    %v36 = vmul.f32 %v33, %v34
    %v37 = vsub.f32 %v21, %v35
    %v38 = vsub.f32 %v22, %v36
    %v39 = vmul.f32 %v37, %v37
    %v40 = vmul.f32 %v38, %v38
    %v41 = vsel %vm27, %v39, 0.0
    %42 = vadd.xlane.f32.xlu0 %v41
    %v43 = vpop.xlane.xlu0 %42
    %v44 = vsel %vm27, %v40, 0.0
    %45 = vadd.xlane.f32.xlu0 %v44
    %v46 = vpop.xlane.xlu0 %45
    %v47 = vrcp.pop 31.0
    %v48 = vmul.f32 %v43, %v47
    %v49 = vmul.f32 %v46, %v47
    %v50 = vlaneseq
    %v51 = vshrl.u32 %v50, 7
    %v52 = vsub.s32 0, %v51
    %v53 = vrot.slane %v25, %v52
    %v54 = vmul.f32 %v53, %v37
    %v55 = vmul.f32 %v53, %v38
    %v56 = vrsqrt.pop %v48
    %v57 = vmul.f32 %v48, %v56
    %vm58 = vcmp.eq.f32.partialorder %v48, inf
    %v59 = vsel %vm58, %v48, %v57
    %vm60 = vcmp.eq.f32.partialorder %v48, 0.0
    %v61 = vand.u32 %v48, 2147483648
    %v62 = vsel %vm60, %v61, %v59
    %v63 = vrsqrt.pop %v49
    %v64 = vmul.f32 %v49, %v63
    %vm65 = vcmp.eq.f32.partialorder %v49, inf
    %v66 = vsel %vm65, %v49, %v64
    %vm67 = vcmp.eq.f32.partialorder %v49, 0.0
    %v68 = vand.u32 %v49, 2147483648
    %v69 = vsel %vm67, %v68, %v66
    %v70 = vadd.f32 %v62, 1e-06
    %v71 = vadd.f32 %v69, 1e-06
    %v72 = vrcp.pop %v70
    %v73 = vmul.f32 %v54, %v72
    %v74 = vrcp.pop %v71
    %v75 = vmul.f32 %v55, %v74
    %v76 = vlaneseq
    %v77 = vshrl.u32 %v76, 7
    %v78 = vsub.s32 0, %v77
    %v79 = vrot.slane %v26, %v78
    %v80 = vadd.f32 %v73, %v79
    %v81 = vadd.f32 %v75, %v79
    %v82 = vld [vmem:[%s4] sm:$0xff]
    %v83 = vld [vmem:[%s4 + $0x8] sm:$0xff]
    %v84 = vld [vmem:[%s4 + $0x10] sm:$0xff]
    %v85 = vld [vmem:[%s4 + $0x18] sm:$0xff]
    %v86 = vld [vmem:[%s4 + $0x100] sm:$0x1]
    %v87 = vlaneseq
    %v88 = vshrl.u32 %v87, 7
    %v89 = vsub.s32 0, %v88
    %v90 = vrot.slane %v86, %v89
    %v92 = vsel %vm27, %v80, 0
    %v95 = vsel %vm27, %v81, 0
    %97 = vmatprep.subr.mxu0 0.0
    %98 = vmatpush1.msra.mxu0 %v82
    %99 = vmatprep.subr.mxu0 0.0
    %100 = vmatpush1.msra.mxu0 %v83
    %101 = vmatprep.subr.mxu0 0.0
    %102 = vmatpush1.msra.mxu0 %v84
    %103 = vmatprep.subr.mxu0 0.0
    %104 = vmatpush1.msra.mxu0 %v85
    %105 = vmatprep.subr.mxu0 0.0
    %106 = vmatpush1.msra.mxu0 0.0
    %107 = vmatprep.subr.mxu0 0.0
    %108 = vmatpush1.msra.mxu0 0.0
    %109 = vmatprep.subr.mxu0 0.0
    %110 = vmatpush1.msra.mxu0 0.0
    %111 = vmatprep.subr.mxu0 0.0
    %112 = vmatpush1.msra.mxu0 0.0
    %113 = vmatprep.subr.mxu0 0.0
    %114 = vmatpush1.msra.mxu0 0.0
    %115 = vmatprep.subr.mxu0 0.0
    %116 = vmatpush1.msra.mxu0 0.0
    %117 = vmatprep.subr.mxu0 0.0
    %118 = vmatpush1.msra.mxu0 0.0
    %119 = vmatprep.subr.mxu0 0.0
    %120 = vmatpush1.msra.mxu0 0.0
    %121 = vmatprep.subr.mxu0 0.0
    %122 = vmatpush1.msra.mxu0 0.0
    %123 = vmatprep.subr.mxu0 0.0
    %124 = vmatpush1.msra.mxu0 0.0
    %125 = vmatprep.subr.mxu0 0.0
    %126 = vmatpush1.msra.mxu0 0.0
    %127 = vmatprep.subr.mxu0 0.0
    %128 = vmatpush1.msra.mxu0 0.0
    %129 = vmatprep.subr.mxu0 0.0
    %130 = vmatpush1.msra.mxu0 0.0
    %131 = vmatprep.subr.mxu0 0.0
    %132 = vmatpush1.msra.mxu0 0.0
    %133 = vmatprep.subr.mxu0 0.0
    %134 = vmatpush1.msra.mxu0 0.0
    %135 = vmatprep.subr.mxu0 0.0
    %136 = vmatpush1.msra.mxu0 0.0
    %137 = vmatprep.subr.mxu0 0.0
    %138 = vmatpush1.msra.mxu0 0.0
    %139 = vmatprep.subr.mxu0 0.0
    %140 = vmatpush1.msra.mxu0 0.0
    %141 = vmatprep.subr.mxu0 0.0
    %142 = vmatpush1.msra.mxu0 0.0
    %143 = vmatprep.subr.mxu0 0.0
    %144 = vmatpush1.msra.mxu0 0.0
    %145 = vmatprep.subr.mxu0 0.0
    %146 = vmatpush1.msra.mxu0 0.0
    %147 = vmatprep.subr.mxu0 0.0
    %148 = vmatpush1.msra.mxu0 0.0
    %149 = vmatprep.subr.mxu0 0.0
    %150 = vmatpush1.msra.mxu0 0.0
    %151 = vmatprep.subr.mxu0 0.0
    %152 = vmatpush1.msra.mxu0 0.0
    %153 = vmatprep.subr.mxu0 0.0
    %154 = vmatpush1.msra.mxu0 0.0
    %155 = vmatprep.subr.mxu0 0.0
    %156 = vmatpush1.msra.mxu0 0.0
    %157 = vmatprep.subr.mxu0 0.0
    %158 = vmatpush1.msra.mxu0 0.0
    %159 = vmatprep.subr.mxu0 0.0
    %160 = vmatpush1.msra.mxu0 0.0
    %161 = vmatprep.mubr.f32.mxu0 0.0
    %162 = vmatmul.mubr.f32.gmra.mrb[0].mxu0 %v92
    %v163 = vpop.f32.mrb[0].mxu0
    %v164 = vadd.f32 %v90, %v163
    %v165 = vpop.f32.mrb[0].mxu0
    %166 = vmatprep.mubr.f32.mxu0 0.0
    %167 = vmatmul.mubr.f32.gmra.mrb[0].mxu0 %v95
    %v168 = vpop.f32.mrb[0].mxu0
    %v169 = vadd.f32 %v90, %v168
    %v170 = vpop.f32.mrb[0].mxu0
    %171 = vdwg.mxu0
    %v172 = vmul.f32 %v164, 0.35355338
    %v173 = vmul.f32 %v169, 0.35355338
    %v174 = vld [vmem:[%s2] sm:$0xff]
    %v175 = vld [vmem:[%s2 + $0x8] sm:$0xff]
    %v176 = vld [vmem:[%s4 + $0x20] sm:$0xff]
    %v177 = vld [vmem:[%s4 + $0x28] sm:$0xff]
    %v178 = vld [vmem:[%s4 + $0x30] sm:$0xff]
    %v179 = vld [vmem:[%s4 + $0x38] sm:$0xff]
    %v180 = vld [vmem:[%s4 + $0x108] sm:$0x1]
    %183 = vrot.lane.b32.xlu0 %v164, 96
    %v184 = vpop.permute.xlu0 %183
    %185 = vrot.lane.b32.xlu0 %v169, 96
    %v186 = vpop.permute.xlu0 %185
    %vm187 = vcmask 64512
    %v189 = vsel %vm187, %v172, 0
    %v192 = vsel %vm187, %v173, 0
    %v194 = vsel %vm187, %v184, 0
    %v196 = vsel %vm187, %v186, 0
    %198 = vmatprep.subr.mxu0 0.0
    %199 = vmatpush1.xpose.msra.mxu0 %v194
    %200 = vmatprep.subr.mxu0 0.0
    %201 = vmatpush1.xpose.msra.mxu0 %v196
    %202 = vmatprep.subr.mxu0 0.0
    %203 = vmatpush1.xpose.msra.mxu0 0.0
    %204 = vmatprep.subr.mxu0 0.0
    %205 = vmatpush1.xpose.msra.mxu0 0.0
    %206 = vmatprep.subr.mxu0 0.0
    %207 = vmatpush1.xpose.msra.mxu0 0.0
    %208 = vmatprep.subr.mxu0 0.0
    %209 = vmatpush1.xpose.msra.mxu0 0.0
    %210 = vmatprep.subr.mxu0 0.0
    %211 = vmatpush1.xpose.msra.mxu0 0.0
    %212 = vmatprep.subr.mxu0 0.0
    %213 = vmatpush1.xpose.msra.mxu0 0.0
    %214 = vmatprep.subr.mxu0 0.0
    %215 = vmatpush1.xpose.msra.mxu0 0.0
    %216 = vmatprep.subr.mxu0 0.0
    %217 = vmatpush1.xpose.msra.mxu0 0.0
    %218 = vmatprep.subr.mxu0 0.0
    %219 = vmatpush1.xpose.msra.mxu0 0.0
    %220 = vmatprep.subr.mxu0 0.0
    %221 = vmatpush1.xpose.msra.mxu0 0.0
    %222 = vmatprep.subr.mxu0 0.0
    %223 = vmatpush1.xpose.msra.mxu0 0.0
    %224 = vmatprep.subr.mxu0 0.0
    %225 = vmatpush1.xpose.msra.mxu0 0.0
    %226 = vmatprep.subr.mxu0 0.0
    %227 = vmatpush1.xpose.msra.mxu0 0.0
    %228 = vmatprep.subr.mxu0 0.0
    %229 = vmatpush1.xpose.msra.mxu0 0.0
    %230 = vmatprep.subr.mxu0 0.0
    %231 = vmatpush1.xpose.msra.mxu0 0.0
    %232 = vmatprep.subr.mxu0 0.0
    %233 = vmatpush1.xpose.msra.mxu0 0.0
    %234 = vmatprep.subr.mxu0 0.0
    %235 = vmatpush1.xpose.msra.mxu0 0.0
    %236 = vmatprep.subr.mxu0 0.0
    %237 = vmatpush1.xpose.msra.mxu0 0.0
    %238 = vmatprep.subr.mxu0 0.0
    %239 = vmatpush1.xpose.msra.mxu0 0.0
    %240 = vmatprep.subr.mxu0 0.0
    %241 = vmatpush1.xpose.msra.mxu0 0.0
    %242 = vmatprep.subr.mxu0 0.0
    %243 = vmatpush1.xpose.msra.mxu0 0.0
    %244 = vmatprep.subr.mxu0 0.0
    %245 = vmatpush1.xpose.msra.mxu0 0.0
    %246 = vmatprep.subr.mxu0 0.0
    %247 = vmatpush1.xpose.msra.mxu0 0.0
    %248 = vmatprep.subr.mxu0 0.0
    %249 = vmatpush1.xpose.msra.mxu0 0.0
    %250 = vmatprep.subr.mxu0 0.0
    %251 = vmatpush1.xpose.msra.mxu0 0.0
    %252 = vmatprep.subr.mxu0 0.0
    %253 = vmatpush1.xpose.msra.mxu0 0.0
    %254 = vmatprep.subr.mxu0 0.0
    %255 = vmatpush1.xpose.msra.mxu0 0.0
    %256 = vmatprep.subr.mxu0 0.0
    %257 = vmatpush1.xpose.msra.mxu0 0.0
    %258 = vmatprep.subr.mxu0 0.0
    %259 = vmatpush1.xpose.msra.mxu0 0.0
    %260 = vmatprep.subr.mxu0 0.0
    %261 = vmatpush1.xpose.msra.mxu0 0.0
    %262 = vmatprep.mubr.f32.mxu0 0.0
    %263 = vmatmul.mubr.f32.gmra.mrb[0].mxu0 %v189
    %v264 = vpop.f32.mrb[0].mxu0
    %v265 = vadd.f32 %v174, %v264
    %v266 = vpop.f32.mrb[0].mxu0
    %267 = vmatprep.mubr.f32.mxu0 0.0
    %268 = vmatmul.mubr.f32.gmra.mrb[0].mxu0 %v192
    %v269 = vpop.f32.mrb[0].mxu0
    %v270 = vadd.f32 %v175, %v269
    %v271 = vpop.f32.mrb[0].mxu0
    %272 = vdwg.mxu0
    %vm273 = vcmask 130048
    %v274 = vsel %vm273, %v265, -inf
    %275 = vmax.xlane.f32.xlu0 %v274
    %v276 = vpop.xlane.xlu0 %275
    %v277 = vsel %vm273, %v270, -inf
    %278 = vmax.xlane.f32.xlu0 %v277
    %v279 = vpop.xlane.xlu0 %278
    %v280 = vsub.f32 %v265, %v276
    %v281 = vsub.f32 %v270, %v279
    %v282 = vmul.f32 %v280, 1.442695
    %v283 = vpow.pop %v282
    %v284 = vmul.f32 %v281, 1.442695
    %v285 = vpow.pop %v284
    %v286 = vsel %vm273, %v283, 0.0
    %287 = vadd.xlane.f32.xlu0 %v286
    %v288 = vpop.xlane.xlu0 %287
    %v289 = vsel %vm273, %v285, 0.0
    %290 = vadd.xlane.f32.xlu0 %v289
    %v291 = vpop.xlane.xlu0 %290
    %v292 = vrcp.pop %v288
    %v293 = vrcp.pop %v291
    %v294 = vmul.f32 %v283, %v292
    %v295 = vmul.f32 %v285, %v293
    %296 = vrot.lane.b32.xlu0 %v164, 64
    %v297 = vpop.permute.xlu0 %296
    %298 = vrot.lane.b32.xlu0 %v169, 64
    %v299 = vpop.permute.xlu0 %298
    %v303 = vsel %vm273, %v294, 0
    %v306 = vsel %vm273, %v295, 0
    %308 = vmatprep.subr.mxu0 0.0
    %309 = vmatpush1.msra.mxu0 %v297
    %310 = vmatprep.subr.mxu0 0.0
    %311 = vmatpush1.msra.mxu0 %v299
    %312 = vmatprep.subr.mxu0 0.0
    %313 = vmatpush1.msra.mxu0 0.0
    %314 = vmatprep.subr.mxu0 0.0
    %315 = vmatpush1.msra.mxu0 0.0
    %316 = vmatprep.subr.mxu0 0.0
    %317 = vmatpush1.msra.mxu0 0.0
    %318 = vmatprep.subr.mxu0 0.0
    %319 = vmatpush1.msra.mxu0 0.0
    %320 = vmatprep.subr.mxu0 0.0
    %321 = vmatpush1.msra.mxu0 0.0
    %322 = vmatprep.subr.mxu0 0.0
    %323 = vmatpush1.msra.mxu0 0.0
    %324 = vmatprep.subr.mxu0 0.0
    %325 = vmatpush1.msra.mxu0 0.0
    %326 = vmatprep.subr.mxu0 0.0
    %327 = vmatpush1.msra.mxu0 0.0
    %328 = vmatprep.subr.mxu0 0.0
    %329 = vmatpush1.msra.mxu0 0.0
    %330 = vmatprep.subr.mxu0 0.0
    %331 = vmatpush1.msra.mxu0 0.0
    %332 = vmatprep.subr.mxu0 0.0
    %333 = vmatpush1.msra.mxu0 0.0
    %334 = vmatprep.subr.mxu0 0.0
    %335 = vmatpush1.msra.mxu0 0.0
    %336 = vmatprep.subr.mxu0 0.0
    %337 = vmatpush1.msra.mxu0 0.0
    %338 = vmatprep.subr.mxu0 0.0
    %339 = vmatpush1.msra.mxu0 0.0
    %340 = vmatprep.subr.mxu0 0.0
    %341 = vmatpush1.msra.mxu0 0.0
    %342 = vmatprep.subr.mxu0 0.0
    %343 = vmatpush1.msra.mxu0 0.0
    %344 = vmatprep.subr.mxu0 0.0
    %345 = vmatpush1.msra.mxu0 0.0
    %346 = vmatprep.subr.mxu0 0.0
    %347 = vmatpush1.msra.mxu0 0.0
    %348 = vmatprep.subr.mxu0 0.0
    %349 = vmatpush1.msra.mxu0 0.0
    %350 = vmatprep.subr.mxu0 0.0
    %351 = vmatpush1.msra.mxu0 0.0
    %352 = vmatprep.subr.mxu0 0.0
    %353 = vmatpush1.msra.mxu0 0.0
    %354 = vmatprep.subr.mxu0 0.0
    %355 = vmatpush1.msra.mxu0 0.0
    %356 = vmatprep.subr.mxu0 0.0
    %357 = vmatpush1.msra.mxu0 0.0
    %358 = vmatprep.subr.mxu0 0.0
    %359 = vmatpush1.msra.mxu0 0.0
    %360 = vmatprep.subr.mxu0 0.0
    %361 = vmatpush1.msra.mxu0 0.0
    %362 = vmatprep.subr.mxu0 0.0
    %363 = vmatpush1.msra.mxu0 0.0
    %364 = vmatprep.subr.mxu0 0.0
    %365 = vmatpush1.msra.mxu0 0.0
    %366 = vmatprep.subr.mxu0 0.0
    %367 = vmatpush1.msra.mxu0 0.0
    %368 = vmatprep.subr.mxu0 0.0
    %369 = vmatpush1.msra.mxu0 0.0
    %370 = vmatprep.subr.mxu0 0.0
    %371 = vmatpush1.msra.mxu0 0.0
    %372 = vmatprep.mubr.f32.mxu0 0.0
    %373 = vmatmul.mubr.f32.gmra.mrb[0].mxu0 %v303
    %v374 = vpop.f32.mrb[0].mxu0
    %v375 = vadd.f32 0.0, %v374
    %v376 = vpop.f32.mrb[0].mxu0
    %377 = vmatprep.mubr.f32.mxu0 0.0
    %378 = vmatmul.mubr.f32.gmra.mrb[0].mxu0 %v306
    %v379 = vpop.f32.mrb[0].mxu0
    %v380 = vadd.f32 0.0, %v379
    %v381 = vpop.f32.mrb[0].mxu0
    %382 = vdwg.mxu0
    %383 = vst.msk [vmem:[#allocation2] sm:$0xff] %vm187, %v375
    %384 = vst.msk [vmem:[#allocation2 + $0x8] sm:$0xff] %vm187, %v380
    %385 = vrot.lane.b32.xlu0 %v172, 120
    %v386 = vpop.permute.xlu0 %385
    %387 = vrot.lane.b32.xlu0 %v173, 120
    %v388 = vpop.permute.xlu0 %387
    %389 = vrot.lane.b32.xlu0 %v164, 88
    %v390 = vpop.permute.xlu0 %389
    %391 = vrot.lane.b32.xlu0 %v169, 88
    %v392 = vpop.permute.xlu0 %391
    %v393 = vsel %vm187, %v386, 0
    %v395 = vsel %vm187, %v388, 0
    %v397 = vsel %vm187, %v390, 0
    %v399 = vsel %vm187, %v392, 0
    %401 = vmatprep.subr.mxu0 0.0
    %402 = vmatpush1.xpose.msra.mxu0 %v397
    %403 = vmatprep.subr.mxu0 0.0
    %404 = vmatpush1.xpose.msra.mxu0 %v399
    %405 = vmatprep.subr.mxu0 0.0
    %406 = vmatpush1.xpose.msra.mxu0 0.0
    %407 = vmatprep.subr.mxu0 0.0
    %408 = vmatpush1.xpose.msra.mxu0 0.0
    %409 = vmatprep.subr.mxu0 0.0
    %410 = vmatpush1.xpose.msra.mxu0 0.0
    %411 = vmatprep.subr.mxu0 0.0
    %412 = vmatpush1.xpose.msra.mxu0 0.0
    %413 = vmatprep.subr.mxu0 0.0
    %414 = vmatpush1.xpose.msra.mxu0 0.0
    %415 = vmatprep.subr.mxu0 0.0
    %416 = vmatpush1.xpose.msra.mxu0 0.0
    %417 = vmatprep.subr.mxu0 0.0
    %418 = vmatpush1.xpose.msra.mxu0 0.0
    %419 = vmatprep.subr.mxu0 0.0
    %420 = vmatpush1.xpose.msra.mxu0 0.0
    %421 = vmatprep.subr.mxu0 0.0
    %422 = vmatpush1.xpose.msra.mxu0 0.0
    %423 = vmatprep.subr.mxu0 0.0
    %424 = vmatpush1.xpose.msra.mxu0 0.0
    %425 = vmatprep.subr.mxu0 0.0
    %426 = vmatpush1.xpose.msra.mxu0 0.0
    %427 = vmatprep.subr.mxu0 0.0
    %428 = vmatpush1.xpose.msra.mxu0 0.0
    %429 = vmatprep.subr.mxu0 0.0
    %430 = vmatpush1.xpose.msra.mxu0 0.0
    %431 = vmatprep.subr.mxu0 0.0
    %432 = vmatpush1.xpose.msra.mxu0 0.0
    %433 = vmatprep.subr.mxu0 0.0
    %434 = vmatpush1.xpose.msra.mxu0 0.0
    %435 = vmatprep.subr.mxu0 0.0
    %436 = vmatpush1.xpose.msra.mxu0 0.0
    %437 = vmatprep.subr.mxu0 0.0
    %438 = vmatpush1.xpose.msra.mxu0 0.0
    %439 = vmatprep.subr.mxu0 0.0
    %440 = vmatpush1.xpose.msra.mxu0 0.0
    %441 = vmatprep.subr.mxu0 0.0
    %442 = vmatpush1.xpose.msra.mxu0 0.0
    %443 = vmatprep.subr.mxu0 0.0
    %444 = vmatpush1.xpose.msra.mxu0 0.0
    %445 = vmatprep.subr.mxu0 0.0
    %446 = vmatpush1.xpose.msra.mxu0 0.0
    %447 = vmatprep.subr.mxu0 0.0
    %448 = vmatpush1.xpose.msra.mxu0 0.0
    %449 = vmatprep.subr.mxu0 0.0
    %450 = vmatpush1.xpose.msra.mxu0 0.0
    %451 = vmatprep.subr.mxu0 0.0
    %452 = vmatpush1.xpose.msra.mxu0 0.0
    %453 = vmatprep.subr.mxu0 0.0
    %454 = vmatpush1.xpose.msra.mxu0 0.0
    %455 = vmatprep.subr.mxu0 0.0
    %456 = vmatpush1.xpose.msra.mxu0 0.0
    %457 = vmatprep.subr.mxu0 0.0
    %458 = vmatpush1.xpose.msra.mxu0 0.0
    %459 = vmatprep.subr.mxu0 0.0
    %460 = vmatpush1.xpose.msra.mxu0 0.0
    %461 = vmatprep.subr.mxu0 0.0
    %462 = vmatpush1.xpose.msra.mxu0 0.0
    %463 = vmatprep.subr.mxu0 0.0
    %464 = vmatpush1.xpose.msra.mxu0 0.0
    %465 = vmatprep.mubr.f32.mxu0 0.0
    %466 = vmatmul.mubr.f32.gmra.mrb[0].mxu0 %v393
    %v467 = vpop.f32.mrb[0].mxu0
    %v468 = vadd.f32 %v174, %v467
    %v469 = vpop.f32.mrb[0].mxu0
    %470 = vmatprep.mubr.f32.mxu0 0.0
    %471 = vmatmul.mubr.f32.gmra.mrb[0].mxu0 %v395
    %v472 = vpop.f32.mrb[0].mxu0
    %v473 = vadd.f32 %v175, %v472
    %v474 = vpop.f32.mrb[0].mxu0
    %475 = vdwg.mxu0
    %v476 = vsel %vm273, %v468, -inf
    %477 = vmax.xlane.f32.xlu0 %v476
    %v478 = vpop.xlane.xlu0 %477
    %v479 = vsel %vm273, %v473, -inf
    %480 = vmax.xlane.f32.xlu0 %v479
    %v481 = vpop.xlane.xlu0 %480
    %v482 = vsub.f32 %v468, %v478
    %v483 = vsub.f32 %v473, %v481
    %v484 = vmul.f32 %v482, 1.442695
    %v485 = vpow.pop %v484
    %v486 = vmul.f32 %v483, 1.442695
    %v487 = vpow.pop %v486
    %v488 = vsel %vm273, %v485, 0.0
    %489 = vadd.xlane.f32.xlu0 %v488
    %v490 = vpop.xlane.xlu0 %489
    %v491 = vsel %vm273, %v487, 0.0
    %492 = vadd.xlane.f32.xlu0 %v491
    %v493 = vpop.xlane.xlu0 %492
    %v494 = vrcp.pop %v490
    %v495 = vrcp.pop %v493
    %v496 = vmul.f32 %v485, %v494
    %v497 = vmul.f32 %v487, %v495
    %498 = vrot.lane.b32.xlu0 %v164, 56
    %v499 = vpop.permute.xlu0 %498
    %500 = vrot.lane.b32.xlu0 %v169, 56
    %v501 = vpop.permute.xlu0 %500
    %v505 = vsel %vm273, %v496, 0
    %v508 = vsel %vm273, %v497, 0
    %510 = vmatprep.subr.mxu0 0.0
    %511 = vmatpush1.msra.mxu0 %v499
    %512 = vmatprep.subr.mxu0 0.0
    %513 = vmatpush1.msra.mxu0 %v501
    %514 = vmatprep.subr.mxu0 0.0
    %515 = vmatpush1.msra.mxu0 0.0
    %516 = vmatprep.subr.mxu0 0.0
    %517 = vmatpush1.msra.mxu0 0.0
    %518 = vmatprep.subr.mxu0 0.0
    %519 = vmatpush1.msra.mxu0 0.0
    %520 = vmatprep.subr.mxu0 0.0
    %521 = vmatpush1.msra.mxu0 0.0
    %522 = vmatprep.subr.mxu0 0.0
    %523 = vmatpush1.msra.mxu0 0.0
    %524 = vmatprep.subr.mxu0 0.0
    %525 = vmatpush1.msra.mxu0 0.0
    %526 = vmatprep.subr.mxu0 0.0
    %527 = vmatpush1.msra.mxu0 0.0
    %528 = vmatprep.subr.mxu0 0.0
    %529 = vmatpush1.msra.mxu0 0.0
    %530 = vmatprep.subr.mxu0 0.0
    %531 = vmatpush1.msra.mxu0 0.0
    %532 = vmatprep.subr.mxu0 0.0
    %533 = vmatpush1.msra.mxu0 0.0
    %534 = vmatprep.subr.mxu0 0.0
    %535 = vmatpush1.msra.mxu0 0.0
    %536 = vmatprep.subr.mxu0 0.0
    %537 = vmatpush1.msra.mxu0 0.0
    %538 = vmatprep.subr.mxu0 0.0
    %539 = vmatpush1.msra.mxu0 0.0
    %540 = vmatprep.subr.mxu0 0.0
    %541 = vmatpush1.msra.mxu0 0.0
    %542 = vmatprep.subr.mxu0 0.0
    %543 = vmatpush1.msra.mxu0 0.0
    %544 = vmatprep.subr.mxu0 0.0
    %545 = vmatpush1.msra.mxu0 0.0
    %546 = vmatprep.subr.mxu0 0.0
    %547 = vmatpush1.msra.mxu0 0.0
    %548 = vmatprep.subr.mxu0 0.0
    %549 = vmatpush1.msra.mxu0 0.0
    %550 = vmatprep.subr.mxu0 0.0
    %551 = vmatpush1.msra.mxu0 0.0
    %552 = vmatprep.subr.mxu0 0.0
    %553 = vmatpush1.msra.mxu0 0.0
    %554 = vmatprep.subr.mxu0 0.0
    %555 = vmatpush1.msra.mxu0 0.0
    %556 = vmatprep.subr.mxu0 0.0
    %557 = vmatpush1.msra.mxu0 0.0
    %558 = vmatprep.subr.mxu0 0.0
    %559 = vmatpush1.msra.mxu0 0.0
    %560 = vmatprep.subr.mxu0 0.0
    %561 = vmatpush1.msra.mxu0 0.0
    %562 = vmatprep.subr.mxu0 0.0
    %563 = vmatpush1.msra.mxu0 0.0
    %564 = vmatprep.subr.mxu0 0.0
    %565 = vmatpush1.msra.mxu0 0.0
    %566 = vmatprep.subr.mxu0 0.0
    %567 = vmatpush1.msra.mxu0 0.0
    %568 = vmatprep.subr.mxu0 0.0
    %569 = vmatpush1.msra.mxu0 0.0
    %570 = vmatprep.subr.mxu0 0.0
    %571 = vmatpush1.msra.mxu0 0.0
    %572 = vmatprep.subr.mxu0 0.0
    %573 = vmatpush1.msra.mxu0 0.0
    %574 = vmatprep.mubr.f32.mxu0 0.0
    %575 = vmatmul.mubr.f32.gmra.mrb[0].mxu0 %v505
    %v576 = vpop.f32.mrb[0].mxu0
    %v577 = vadd.f32 0.0, %v576
    %v578 = vpop.f32.mrb[0].mxu0
    %579 = vmatprep.mubr.f32.mxu0 0.0
    %580 = vmatmul.mubr.f32.gmra.mrb[0].mxu0 %v508
    %v581 = vpop.f32.mrb[0].mxu0
    %v582 = vadd.f32 0.0, %v581
    %v583 = vpop.f32.mrb[0].mxu0
    %584 = vdwg.mxu0
    %587 = vrot.lane.b32.xlu0 %v577, 8
    %v588 = vpop.permute.xlu0 %587
    %589 = vrot.lane.b32.xlu0 %v582, 8
    %v590 = vpop.permute.xlu0 %589
    %vm593 = vcmask 130112
    %594 = vst.msk [vmem:[#allocation2] sm:$0xff] %vm593, %v588
    %595 = vst.msk [vmem:[#allocation2 + $0x8] sm:$0xff] %vm593, %v590
    %596 = vrot.lane.b32.xlu0 %v172, 112
    %v597 = vpop.permute.xlu0 %596
    %598 = vrot.lane.b32.xlu0 %v173, 112
    %v599 = vpop.permute.xlu0 %598
    %600 = vrot.lane.b32.xlu0 %v164, 80
    %v601 = vpop.permute.xlu0 %600
    %602 = vrot.lane.b32.xlu0 %v169, 80
    %v603 = vpop.permute.xlu0 %602
    %v604 = vsel %vm187, %v597, 0
    %v606 = vsel %vm187, %v599, 0
    %v608 = vsel %vm187, %v601, 0
    %v610 = vsel %vm187, %v603, 0
    %612 = vmatprep.subr.mxu0 0.0
    %613 = vmatpush1.xpose.msra.mxu0 %v608
    %614 = vmatprep.subr.mxu0 0.0
    %615 = vmatpush1.xpose.msra.mxu0 %v610
    %616 = vmatprep.subr.mxu0 0.0
    %617 = vmatpush1.xpose.msra.mxu0 0.0
    %618 = vmatprep.subr.mxu0 0.0
    %619 = vmatpush1.xpose.msra.mxu0 0.0
    %620 = vmatprep.subr.mxu0 0.0
    %621 = vmatpush1.xpose.msra.mxu0 0.0
    %622 = vmatprep.subr.mxu0 0.0
    %623 = vmatpush1.xpose.msra.mxu0 0.0
    %624 = vmatprep.subr.mxu0 0.0
    %625 = vmatpush1.xpose.msra.mxu0 0.0
    %626 = vmatprep.subr.mxu0 0.0
    %627 = vmatpush1.xpose.msra.mxu0 0.0
    %628 = vmatprep.subr.mxu0 0.0
    %629 = vmatpush1.xpose.msra.mxu0 0.0
    %630 = vmatprep.subr.mxu0 0.0
    %631 = vmatpush1.xpose.msra.mxu0 0.0
    %632 = vmatprep.subr.mxu0 0.0
    %633 = vmatpush1.xpose.msra.mxu0 0.0
    %634 = vmatprep.subr.mxu0 0.0
    %635 = vmatpush1.xpose.msra.mxu0 0.0
    %636 = vmatprep.subr.mxu0 0.0
    %637 = vmatpush1.xpose.msra.mxu0 0.0
    %638 = vmatprep.subr.mxu0 0.0
    %639 = vmatpush1.xpose.msra.mxu0 0.0
    %640 = vmatprep.subr.mxu0 0.0
    %641 = vmatpush1.xpose.msra.mxu0 0.0
    %642 = vmatprep.subr.mxu0 0.0
    %643 = vmatpush1.xpose.msra.mxu0 0.0
    %644 = vmatprep.subr.mxu0 0.0
    %645 = vmatpush1.xpose.msra.mxu0 0.0
    %646 = vmatprep.subr.mxu0 0.0
    %647 = vmatpush1.xpose.msra.mxu0 0.0
    %648 = vmatprep.subr.mxu0 0.0
    %649 = vmatpush1.xpose.msra.mxu0 0.0
    %650 = vmatprep.subr.mxu0 0.0
    %651 = vmatpush1.xpose.msra.mxu0 0.0
    %652 = vmatprep.subr.mxu0 0.0
    %653 = vmatpush1.xpose.msra.mxu0 0.0
    %654 = vmatprep.subr.mxu0 0.0
    %655 = vmatpush1.xpose.msra.mxu0 0.0
    %656 = vmatprep.subr.mxu0 0.0
    %657 = vmatpush1.xpose.msra.mxu0 0.0
    %658 = vmatprep.subr.mxu0 0.0
    %659 = vmatpush1.xpose.msra.mxu0 0.0
    %660 = vmatprep.subr.mxu0 0.0
    %661 = vmatpush1.xpose.msra.mxu0 0.0
    %662 = vmatprep.subr.mxu0 0.0
    %663 = vmatpush1.xpose.msra.mxu0 0.0
    %664 = vmatprep.subr.mxu0 0.0
    %665 = vmatpush1.xpose.msra.mxu0 0.0
    %666 = vmatprep.subr.mxu0 0.0
    %667 = vmatpush1.xpose.msra.mxu0 0.0
    %668 = vmatprep.subr.mxu0 0.0
    %669 = vmatpush1.xpose.msra.mxu0 0.0
    %670 = vmatprep.subr.mxu0 0.0
    %671 = vmatpush1.xpose.msra.mxu0 0.0
    %672 = vmatprep.subr.mxu0 0.0
    %673 = vmatpush1.xpose.msra.mxu0 0.0
    %674 = vmatprep.subr.mxu0 0.0
    %675 = vmatpush1.xpose.msra.mxu0 0.0
    %676 = vmatprep.mubr.f32.mxu0 0.0
    %677 = vmatmul.mubr.f32.gmra.mrb[0].mxu0 %v604
    %v678 = vpop.f32.mrb[0].mxu0
    %v679 = vadd.f32 %v174, %v678
    %v680 = vpop.f32.mrb[0].mxu0
    %681 = vmatprep.mubr.f32.mxu0 0.0
    %682 = vmatmul.mubr.f32.gmra.mrb[0].mxu0 %v606
    %v683 = vpop.f32.mrb[0].mxu0
    %v684 = vadd.f32 %v175, %v683
    %v685 = vpop.f32.mrb[0].mxu0
    %686 = vdwg.mxu0
    %v687 = vsel %vm273, %v679, -inf
    %688 = vmax.xlane.f32.xlu0 %v687
    %v689 = vpop.xlane.xlu0 %688
    %v690 = vsel %vm273, %v684, -inf
    %691 = vmax.xlane.f32.xlu0 %v690
    %v692 = vpop.xlane.xlu0 %691
    %v693 = vsub.f32 %v679, %v689
    %v694 = vsub.f32 %v684, %v692
    %v695 = vmul.f32 %v693, 1.442695
    %v696 = vpow.pop %v695
    %v697 = vmul.f32 %v694, 1.442695
    %v698 = vpow.pop %v697
    %v699 = vsel %vm273, %v696, 0.0
    %700 = vadd.xlane.f32.xlu0 %v699
    %v701 = vpop.xlane.xlu0 %700
    %v702 = vsel %vm273, %v698, 0.0
    %703 = vadd.xlane.f32.xlu0 %v702
    %v704 = vpop.xlane.xlu0 %703
    %v705 = vrcp.pop %v701
    %v706 = vrcp.pop %v704
    %v707 = vmul.f32 %v696, %v705
    %v708 = vmul.f32 %v698, %v706
    %709 = vrot.lane.b32.xlu0 %v164, 48
    %v710 = vpop.permute.xlu0 %709
    %711 = vrot.lane.b32.xlu0 %v169, 48
    %v712 = vpop.permute.xlu0 %711
    %v716 = vsel %vm273, %v707, 0
    %v719 = vsel %vm273, %v708, 0
    %721 = vmatprep.subr.mxu0 0.0
    %722 = vmatpush1.msra.mxu0 %v710
    %723 = vmatprep.subr.mxu0 0.0
    %724 = vmatpush1.msra.mxu0 %v712
    %725 = vmatprep.subr.mxu0 0.0
    %726 = vmatpush1.msra.mxu0 0.0
    %727 = vmatprep.subr.mxu0 0.0
    %728 = vmatpush1.msra.mxu0 0.0
    %729 = vmatprep.subr.mxu0 0.0
    %730 = vmatpush1.msra.mxu0 0.0
    %731 = vmatprep.subr.mxu0 0.0
    %732 = vmatpush1.msra.mxu0 0.0
    %733 = vmatprep.subr.mxu0 0.0
    %734 = vmatpush1.msra.mxu0 0.0
    %735 = vmatprep.subr.mxu0 0.0
    %736 = vmatpush1.msra.mxu0 0.0
    %737 = vmatprep.subr.mxu0 0.0
    %738 = vmatpush1.msra.mxu0 0.0
    %739 = vmatprep.subr.mxu0 0.0
    %740 = vmatpush1.msra.mxu0 0.0
    %741 = vmatprep.subr.mxu0 0.0
    %742 = vmatpush1.msra.mxu0 0.0
    %743 = vmatprep.subr.mxu0 0.0
    %744 = vmatpush1.msra.mxu0 0.0
    %745 = vmatprep.subr.mxu0 0.0
    %746 = vmatpush1.msra.mxu0 0.0
    %747 = vmatprep.subr.mxu0 0.0
    %748 = vmatpush1.msra.mxu0 0.0
    %749 = vmatprep.subr.mxu0 0.0
    %750 = vmatpush1.msra.mxu0 0.0
    %751 = vmatprep.subr.mxu0 0.0
    %752 = vmatpush1.msra.mxu0 0.0
    %753 = vmatprep.subr.mxu0 0.0
    %754 = vmatpush1.msra.mxu0 0.0
    %755 = vmatprep.subr.mxu0 0.0
    %756 = vmatpush1.msra.mxu0 0.0
    %757 = vmatprep.subr.mxu0 0.0
    %758 = vmatpush1.msra.mxu0 0.0
    %759 = vmatprep.subr.mxu0 0.0
    %760 = vmatpush1.msra.mxu0 0.0
    %761 = vmatprep.subr.mxu0 0.0
    %762 = vmatpush1.msra.mxu0 0.0
    %763 = vmatprep.subr.mxu0 0.0
    %764 = vmatpush1.msra.mxu0 0.0
    %765 = vmatprep.subr.mxu0 0.0
    %766 = vmatpush1.msra.mxu0 0.0
    %767 = vmatprep.subr.mxu0 0.0
    %768 = vmatpush1.msra.mxu0 0.0
    %769 = vmatprep.subr.mxu0 0.0
    %770 = vmatpush1.msra.mxu0 0.0
    %771 = vmatprep.subr.mxu0 0.0
    %772 = vmatpush1.msra.mxu0 0.0
    %773 = vmatprep.subr.mxu0 0.0
    %774 = vmatpush1.msra.mxu0 0.0
    %775 = vmatprep.subr.mxu0 0.0
    %776 = vmatpush1.msra.mxu0 0.0
    %777 = vmatprep.subr.mxu0 0.0
    %778 = vmatpush1.msra.mxu0 0.0
    %779 = vmatprep.subr.mxu0 0.0
    %780 = vmatpush1.msra.mxu0 0.0
    %781 = vmatprep.subr.mxu0 0.0
    %782 = vmatpush1.msra.mxu0 0.0
    %783 = vmatprep.subr.mxu0 0.0
    %784 = vmatpush1.msra.mxu0 0.0
    %785 = vmatprep.mubr.f32.mxu0 0.0
    %786 = vmatmul.mubr.f32.gmra.mrb[0].mxu0 %v716
    %v787 = vpop.f32.mrb[0].mxu0
    %v788 = vadd.f32 0.0, %v787
    %v789 = vpop.f32.mrb[0].mxu0
    %790 = vmatprep.mubr.f32.mxu0 0.0
    %791 = vmatmul.mubr.f32.gmra.mrb[0].mxu0 %v719
    %v792 = vpop.f32.mrb[0].mxu0
    %v793 = vadd.f32 0.0, %v792
    %v794 = vpop.f32.mrb[0].mxu0
    %795 = vdwg.mxu0
    %798 = vrot.lane.b32.xlu0 %v788, 16
    %v799 = vpop.permute.xlu0 %798
    %800 = vrot.lane.b32.xlu0 %v793, 16
    %v801 = vpop.permute.xlu0 %800
    %vm804 = vcmask 195712
    %805 = vst.msk [vmem:[#allocation2] sm:$0xff] %vm804, %v799
    %806 = vst.msk [vmem:[#allocation2 + $0x8] sm:$0xff] %vm804, %v801
    %807 = vrot.lane.b32.xlu0 %v172, 104
    %v808 = vpop.permute.xlu0 %807
    %809 = vrot.lane.b32.xlu0 %v173, 104
    %v810 = vpop.permute.xlu0 %809
    %811 = vrot.lane.b32.xlu0 %v164, 72
    %v812 = vpop.permute.xlu0 %811
    %813 = vrot.lane.b32.xlu0 %v169, 72
    %v814 = vpop.permute.xlu0 %813
    %v815 = vsel %vm187, %v808, 0
    %v817 = vsel %vm187, %v810, 0
    %v819 = vsel %vm187, %v812, 0
    %v821 = vsel %vm187, %v814, 0
    %823 = vmatprep.subr.mxu0 0.0
    %824 = vmatpush1.xpose.msra.mxu0 %v819
    %825 = vmatprep.subr.mxu0 0.0
    %826 = vmatpush1.xpose.msra.mxu0 %v821
    %827 = vmatprep.subr.mxu0 0.0
    %828 = vmatpush1.xpose.msra.mxu0 0.0
    %829 = vmatprep.subr.mxu0 0.0
    %830 = vmatpush1.xpose.msra.mxu0 0.0
    %831 = vmatprep.subr.mxu0 0.0
    %832 = vmatpush1.xpose.msra.mxu0 0.0
    %833 = vmatprep.subr.mxu0 0.0
    %834 = vmatpush1.xpose.msra.mxu0 0.0
    %835 = vmatprep.subr.mxu0 0.0
    %836 = vmatpush1.xpose.msra.mxu0 0.0
    %837 = vmatprep.subr.mxu0 0.0
    %838 = vmatpush1.xpose.msra.mxu0 0.0
    %839 = vmatprep.subr.mxu0 0.0
    %840 = vmatpush1.xpose.msra.mxu0 0.0
    %841 = vmatprep.subr.mxu0 0.0
    %842 = vmatpush1.xpose.msra.mxu0 0.0
    %843 = vmatprep.subr.mxu0 0.0
    %844 = vmatpush1.xpose.msra.mxu0 0.0
    %845 = vmatprep.subr.mxu0 0.0
    %846 = vmatpush1.xpose.msra.mxu0 0.0
    %847 = vmatprep.subr.mxu0 0.0
    %848 = vmatpush1.xpose.msra.mxu0 0.0
    %849 = vmatprep.subr.mxu0 0.0
    %850 = vmatpush1.xpose.msra.mxu0 0.0
    %851 = vmatprep.subr.mxu0 0.0
    %852 = vmatpush1.xpose.msra.mxu0 0.0
    %853 = vmatprep.subr.mxu0 0.0
    %854 = vmatpush1.xpose.msra.mxu0 0.0
    %855 = vmatprep.subr.mxu0 0.0
    %856 = vmatpush1.xpose.msra.mxu0 0.0
    %857 = vmatprep.subr.mxu0 0.0
    %858 = vmatpush1.xpose.msra.mxu0 0.0
    %859 = vmatprep.subr.mxu0 0.0
    %860 = vmatpush1.xpose.msra.mxu0 0.0
    %861 = vmatprep.subr.mxu0 0.0
    %862 = vmatpush1.xpose.msra.mxu0 0.0
    %863 = vmatprep.subr.mxu0 0.0
    %864 = vmatpush1.xpose.msra.mxu0 0.0
    %865 = vmatprep.subr.mxu0 0.0
    %866 = vmatpush1.xpose.msra.mxu0 0.0
    %867 = vmatprep.subr.mxu0 0.0
    %868 = vmatpush1.xpose.msra.mxu0 0.0
    %869 = vmatprep.subr.mxu0 0.0
    %870 = vmatpush1.xpose.msra.mxu0 0.0
    %871 = vmatprep.subr.mxu0 0.0
    %872 = vmatpush1.xpose.msra.mxu0 0.0
    %873 = vmatprep.subr.mxu0 0.0
    %874 = vmatpush1.xpose.msra.mxu0 0.0
    %875 = vmatprep.subr.mxu0 0.0
    %876 = vmatpush1.xpose.msra.mxu0 0.0
    %877 = vmatprep.subr.mxu0 0.0
    %878 = vmatpush1.xpose.msra.mxu0 0.0
    %879 = vmatprep.subr.mxu0 0.0
    %880 = vmatpush1.xpose.msra.mxu0 0.0
    %881 = vmatprep.subr.mxu0 0.0
    %882 = vmatpush1.xpose.msra.mxu0 0.0
    %883 = vmatprep.subr.mxu0 0.0
    %884 = vmatpush1.xpose.msra.mxu0 0.0
    %885 = vmatprep.subr.mxu0 0.0
    %886 = vmatpush1.xpose.msra.mxu0 0.0
    %887 = vmatprep.mubr.f32.mxu0 0.0
    %888 = vmatmul.mubr.f32.gmra.mrb[0].mxu0 %v815
    %v889 = vpop.f32.mrb[0].mxu0
    %v890 = vadd.f32 %v174, %v889
    %v891 = vpop.f32.mrb[0].mxu0
    %892 = vmatprep.mubr.f32.mxu0 0.0
    %893 = vmatmul.mubr.f32.gmra.mrb[0].mxu0 %v817
    %v894 = vpop.f32.mrb[0].mxu0
    %v895 = vadd.f32 %v175, %v894
    %v896 = vpop.f32.mrb[0].mxu0
    %897 = vdwg.mxu0
    %v898 = vsel %vm273, %v890, -inf
    %899 = vmax.xlane.f32.xlu0 %v898
    %v900 = vpop.xlane.xlu0 %899
    %v901 = vsel %vm273, %v895, -inf
    %902 = vmax.xlane.f32.xlu0 %v901
    %v903 = vpop.xlane.xlu0 %902
    %v904 = vsub.f32 %v890, %v900
    %v905 = vsub.f32 %v895, %v903
    %v906 = vmul.f32 %v904, 1.442695
    %v907 = vpow.pop %v906
    %v908 = vmul.f32 %v905, 1.442695
    %v909 = vpow.pop %v908
    %v910 = vsel %vm273, %v907, 0.0
    %911 = vadd.xlane.f32.xlu0 %v910
    %v912 = vpop.xlane.xlu0 %911
    %v913 = vsel %vm273, %v909, 0.0
    %914 = vadd.xlane.f32.xlu0 %v913
    %v915 = vpop.xlane.xlu0 %914
    %v916 = vrcp.pop %v912
    %v917 = vrcp.pop %v915
    %v918 = vmul.f32 %v907, %v916
    %v919 = vmul.f32 %v909, %v917
    %920 = vrot.lane.b32.xlu0 %v164, 40
    %v921 = vpop.permute.xlu0 %920
    %922 = vrot.lane.b32.xlu0 %v169, 40
    %v923 = vpop.permute.xlu0 %922
    %v927 = vsel %vm273, %v918, 0
    %v930 = vsel %vm273, %v919, 0
    %932 = vmatprep.subr.mxu0 0.0
    %933 = vmatpush1.msra.mxu0 %v921
    %934 = vmatprep.subr.mxu0 0.0
    %935 = vmatpush1.msra.mxu0 %v923
    %936 = vmatprep.subr.mxu0 0.0
    %937 = vmatpush1.msra.mxu0 0.0
    %938 = vmatprep.subr.mxu0 0.0
    %939 = vmatpush1.msra.mxu0 0.0
    %940 = vmatprep.subr.mxu0 0.0
    %941 = vmatpush1.msra.mxu0 0.0
    %942 = vmatprep.subr.mxu0 0.0
    %943 = vmatpush1.msra.mxu0 0.0
    %944 = vmatprep.subr.mxu0 0.0
    %945 = vmatpush1.msra.mxu0 0.0
    %946 = vmatprep.subr.mxu0 0.0
    %947 = vmatpush1.msra.mxu0 0.0
    %948 = vmatprep.subr.mxu0 0.0
    %949 = vmatpush1.msra.mxu0 0.0
    %950 = vmatprep.subr.mxu0 0.0
    %951 = vmatpush1.msra.mxu0 0.0
    %952 = vmatprep.subr.mxu0 0.0
    %953 = vmatpush1.msra.mxu0 0.0
    %954 = vmatprep.subr.mxu0 0.0
    %955 = vmatpush1.msra.mxu0 0.0
    %956 = vmatprep.subr.mxu0 0.0
    %957 = vmatpush1.msra.mxu0 0.0
    %958 = vmatprep.subr.mxu0 0.0
    %959 = vmatpush1.msra.mxu0 0.0
    %960 = vmatprep.subr.mxu0 0.0
    %961 = vmatpush1.msra.mxu0 0.0
    %962 = vmatprep.subr.mxu0 0.0
    %963 = vmatpush1.msra.mxu0 0.0
    %964 = vmatprep.subr.mxu0 0.0
    %965 = vmatpush1.msra.mxu0 0.0
    %966 = vmatprep.subr.mxu0 0.0
    %967 = vmatpush1.msra.mxu0 0.0
    %968 = vmatprep.subr.mxu0 0.0
    %969 = vmatpush1.msra.mxu0 0.0
    %970 = vmatprep.subr.mxu0 0.0
    %971 = vmatpush1.msra.mxu0 0.0
    %972 = vmatprep.subr.mxu0 0.0
    %973 = vmatpush1.msra.mxu0 0.0
    %974 = vmatprep.subr.mxu0 0.0
    %975 = vmatpush1.msra.mxu0 0.0
    %976 = vmatprep.subr.mxu0 0.0
    %977 = vmatpush1.msra.mxu0 0.0
    %978 = vmatprep.subr.mxu0 0.0
    %979 = vmatpush1.msra.mxu0 0.0
    %980 = vmatprep.subr.mxu0 0.0
    %981 = vmatpush1.msra.mxu0 0.0
    %982 = vmatprep.subr.mxu0 0.0
    %983 = vmatpush1.msra.mxu0 0.0
    %984 = vmatprep.subr.mxu0 0.0
    %985 = vmatpush1.msra.mxu0 0.0
    %986 = vmatprep.subr.mxu0 0.0
    %987 = vmatpush1.msra.mxu0 0.0
    %988 = vmatprep.subr.mxu0 0.0
    %989 = vmatpush1.msra.mxu0 0.0
    %990 = vmatprep.subr.mxu0 0.0
    %991 = vmatpush1.msra.mxu0 0.0
    %992 = vmatprep.subr.mxu0 0.0
    %993 = vmatpush1.msra.mxu0 0.0
    %994 = vmatprep.subr.mxu0 0.0
    %995 = vmatpush1.msra.mxu0 0.0
    %996 = vmatprep.mubr.f32.mxu0 0.0
    %997 = vmatmul.mubr.f32.gmra.mrb[0].mxu0 %v927
    %v998 = vpop.f32.mrb[0].mxu0
    %v999 = vadd.f32 0.0, %v998
    %v1000 = vpop.f32.mrb[0].mxu0
    %1001 = vmatprep.mubr.f32.mxu0 0.0
    %1002 = vmatmul.mubr.f32.gmra.mrb[0].mxu0 %v930
    %v1003 = vpop.f32.mrb[0].mxu0
    %v1004 = vadd.f32 0.0, %v1003
    %v1005 = vpop.f32.mrb[0].mxu0
    %1006 = vdwg.mxu0
    %1009 = vrot.lane.b32.xlu0 %v999, 24
    %v1010 = vpop.permute.xlu0 %1009
    %1011 = vrot.lane.b32.xlu0 %v1004, 24
    %v1012 = vpop.permute.xlu0 %1011
    %vm1015 = vcmask 261312
    %1016 = vst.msk [vmem:[#allocation2] sm:$0xff] %vm1015, %v1010
    %1017 = vst.msk [vmem:[#allocation2 + $0x8] sm:$0xff] %vm1015, %v1012
    %v1018 = vld [vmem:[#allocation2] sm:$0xff]
    %v1019 = vld [vmem:[#allocation2 + $0x8] sm:$0xff]
    %v1020 = vlaneseq
    %v1021 = vshrl.u32 %v1020, 7
    %v1022 = vsub.s32 0, %v1021
    %v1023 = vrot.slane %v180, %v1022
    %v1025 = vsel %vm27, %v1018, 0
    %v1028 = vsel %vm27, %v1019, 0
    %1030 = vmatprep.subr.mxu0 0.0
    %1031 = vmatpush1.msra.mxu0 %v176
    %1032 = vmatprep.subr.mxu0 0.0
    %1033 = vmatpush1.msra.mxu0 %v177
    %1034 = vmatprep.subr.mxu0 0.0
    %1035 = vmatpush1.msra.mxu0 %v178
    %1036 = vmatprep.subr.mxu0 0.0
    %1037 = vmatpush1.msra.mxu0 %v179
    %1038 = vmatprep.subr.mxu0 0.0
    %1039 = vmatpush1.msra.mxu0 0.0
    %1040 = vmatprep.subr.mxu0 0.0
    %1041 = vmatpush1.msra.mxu0 0.0
    %1042 = vmatprep.subr.mxu0 0.0
    %1043 = vmatpush1.msra.mxu0 0.0
    %1044 = vmatprep.subr.mxu0 0.0
    %1045 = vmatpush1.msra.mxu0 0.0
    %1046 = vmatprep.subr.mxu0 0.0
    %1047 = vmatpush1.msra.mxu0 0.0
    %1048 = vmatprep.subr.mxu0 0.0
    %1049 = vmatpush1.msra.mxu0 0.0
    %1050 = vmatprep.subr.mxu0 0.0
    %1051 = vmatpush1.msra.mxu0 0.0
    %1052 = vmatprep.subr.mxu0 0.0
    %1053 = vmatpush1.msra.mxu0 0.0
    %1054 = vmatprep.subr.mxu0 0.0
    %1055 = vmatpush1.msra.mxu0 0.0
    %1056 = vmatprep.subr.mxu0 0.0
    %1057 = vmatpush1.msra.mxu0 0.0
    %1058 = vmatprep.subr.mxu0 0.0
    %1059 = vmatpush1.msra.mxu0 0.0
    %1060 = vmatprep.subr.mxu0 0.0
    %1061 = vmatpush1.msra.mxu0 0.0
    %1062 = vmatprep.subr.mxu0 0.0
    %1063 = vmatpush1.msra.mxu0 0.0
    %1064 = vmatprep.subr.mxu0 0.0
    %1065 = vmatpush1.msra.mxu0 0.0
    %1066 = vmatprep.subr.mxu0 0.0
    %1067 = vmatpush1.msra.mxu0 0.0
    %1068 = vmatprep.subr.mxu0 0.0
    %1069 = vmatpush1.msra.mxu0 0.0
    %1070 = vmatprep.subr.mxu0 0.0
    %1071 = vmatpush1.msra.mxu0 0.0
    %1072 = vmatprep.subr.mxu0 0.0
    %1073 = vmatpush1.msra.mxu0 0.0
    %1074 = vmatprep.subr.mxu0 0.0
    %1075 = vmatpush1.msra.mxu0 0.0
    %1076 = vmatprep.subr.mxu0 0.0
    %1077 = vmatpush1.msra.mxu0 0.0
    %1078 = vmatprep.subr.mxu0 0.0
    %1079 = vmatpush1.msra.mxu0 0.0
    %1080 = vmatprep.subr.mxu0 0.0
    %1081 = vmatpush1.msra.mxu0 0.0
    %1082 = vmatprep.subr.mxu0 0.0
    %1083 = vmatpush1.msra.mxu0 0.0
    %1084 = vmatprep.subr.mxu0 0.0
    %1085 = vmatpush1.msra.mxu0 0.0
    %1086 = vmatprep.subr.mxu0 0.0
    %1087 = vmatpush1.msra.mxu0 0.0
    %1088 = vmatprep.subr.mxu0 0.0
    %1089 = vmatpush1.msra.mxu0 0.0
    %1090 = vmatprep.subr.mxu0 0.0
    %1091 = vmatpush1.msra.mxu0 0.0
    %1092 = vmatprep.subr.mxu0 0.0
    %1093 = vmatpush1.msra.mxu0 0.0
    %1094 = vmatprep.mubr.f32.mxu0 0.0
    %1095 = vmatmul.mubr.f32.gmra.mrb[0].mxu0 %v1025
    %v1096 = vpop.f32.mrb[0].mxu0
    %v1097 = vadd.f32 %v1023, %v1096
    %v1098 = vpop.f32.mrb[0].mxu0
    %1099 = vmatprep.mubr.f32.mxu0 0.0
    %1100 = vmatmul.mubr.f32.gmra.mrb[0].mxu0 %v1028
    %v1101 = vpop.f32.mrb[0].mxu0
    %v1102 = vadd.f32 %v1023, %v1101
    %v1103 = vpop.f32.mrb[0].mxu0
    %1104 = vdwg.mxu0
    %v1105 = vadd.f32 %v21, %v1097
    %v1106 = vadd.f32 %v22, %v1102
    %v1107 = vsel %vm27, %v1105, 0.0
    %1108 = vadd.xlane.f32.xlu0 %v1107
    %v1109 = vpop.xlane.xlu0 %1108
    %v1110 = vsel %vm27, %v1106, 0.0
    %1111 = vadd.xlane.f32.xlu0 %v1110
    %v1112 = vpop.xlane.xlu0 %1111
    %v1113 = vmul.f32 %v1109, %v34
    %v1114 = vmul.f32 %v1112, %v34
    %v1115 = vsub.f32 %v1105, %v1113
    %v1116 = vsub.f32 %v1106, %v1114
    %v1117 = vmul.f32 %v1115, %v1115
    %v1118 = vmul.f32 %v1116, %v1116
    %v1119 = vsel %vm27, %v1117, 0.0
    %1120 = vadd.xlane.f32.xlu0 %v1119
    %v1121 = vpop.xlane.xlu0 %1120
    %v1122 = vsel %vm27, %v1118, 0.0
    %1123 = vadd.xlane.f32.xlu0 %v1122
    %v1124 = vpop.xlane.xlu0 %1123
    %v1125 = vmul.f32 %v1121, %v47
    %v1126 = vmul.f32 %v1124, %v47
    %v1127 = vlaneseq
    %v1128 = vshrl.u32 %v1127, 7
    %v1129 = vsub.s32 1, %v1128
    %v1130 = vrot.slane %v25, %v1129
    %v1131 = vmul.f32 %v1130, %v1115
    %v1132 = vmul.f32 %v1130, %v1116
    %v1133 = vrsqrt.pop %v1125
    %v1134 = vmul.f32 %v1125, %v1133
    %vm1135 = vcmp.eq.f32.partialorder %v1125, inf
    %v1136 = vsel %vm1135, %v1125, %v1134
    %vm1137 = vcmp.eq.f32.partialorder %v1125, 0.0
    %v1138 = vand.u32 %v1125, 2147483648
    %v1139 = vsel %vm1137, %v1138, %v1136
    %v1140 = vrsqrt.pop %v1126
    %v1141 = vmul.f32 %v1126, %v1140
    %vm1142 = vcmp.eq.f32.partialorder %v1126, inf
    %v1143 = vsel %vm1142, %v1126, %v1141
    %vm1144 = vcmp.eq.f32.partialorder %v1126, 0.0
    %v1145 = vand.u32 %v1126, 2147483648
    %v1146 = vsel %vm1144, %v1145, %v1143
    %v1147 = vadd.f32 %v1139, 1e-06
    %v1148 = vadd.f32 %v1146, 1e-06
    %v1149 = vrcp.pop %v1147
    %v1150 = vmul.f32 %v1131, %v1149
    %v1151 = vrcp.pop %v1148
    %v1152 = vmul.f32 %v1132, %v1151
    %v1153 = vlaneseq
    %v1154 = vshrl.u32 %v1153, 7
    %v1155 = vsub.s32 1, %v1154
    %v1156 = vrot.slane %v26, %v1155
    %v1157 = vadd.f32 %v1150, %v1156
    %v1158 = vadd.f32 %v1152, %v1156
    %v1159 = vld [vmem:[%s4 + $0x40] sm:$0xff]
    %v1160 = vld [vmem:[%s4 + $0x48] sm:$0xff]
    %v1161 = vld [vmem:[%s4 + $0x50] sm:$0xff]
    %v1162 = vld [vmem:[%s4 + $0x58] sm:$0xff]
    %v1163 = vld [vmem:[%s4 + $0x110] sm:$0x1]
    %v1164 = vlaneseq
    %v1165 = vshrl.u32 %v1164, 7
    %v1166 = vsub.s32 0, %v1165
    %v1167 = vrot.slane %v1163, %v1166
    %v1169 = vsel %vm27, %v1157, 0
    %v1172 = vsel %vm27, %v1158, 0
    %1174 = vmatprep.subr.mxu0 0.0
    %1175 = vmatpush1.msra.mxu0 %v1159
    %1176 = vmatprep.subr.mxu0 0.0
    %1177 = vmatpush1.msra.mxu0 %v1160
    %1178 = vmatprep.subr.mxu0 0.0
    %1179 = vmatpush1.msra.mxu0 %v1161
    %1180 = vmatprep.subr.mxu0 0.0
    %1181 = vmatpush1.msra.mxu0 %v1162
    %1182 = vmatprep.subr.mxu0 0.0
    %1183 = vmatpush1.msra.mxu0 0.0
    %1184 = vmatprep.subr.mxu0 0.0
    %1185 = vmatpush1.msra.mxu0 0.0
    %1186 = vmatprep.subr.mxu0 0.0
    %1187 = vmatpush1.msra.mxu0 0.0
    %1188 = vmatprep.subr.mxu0 0.0
    %1189 = vmatpush1.msra.mxu0 0.0
    %1190 = vmatprep.subr.mxu0 0.0
    %1191 = vmatpush1.msra.mxu0 0.0
    %1192 = vmatprep.subr.mxu0 0.0
    %1193 = vmatpush1.msra.mxu0 0.0
    %1194 = vmatprep.subr.mxu0 0.0
    %1195 = vmatpush1.msra.mxu0 0.0
    %1196 = vmatprep.subr.mxu0 0.0
    %1197 = vmatpush1.msra.mxu0 0.0
    %1198 = vmatprep.subr.mxu0 0.0
    %1199 = vmatpush1.msra.mxu0 0.0
    %1200 = vmatprep.subr.mxu0 0.0
    %1201 = vmatpush1.msra.mxu0 0.0
    %1202 = vmatprep.subr.mxu0 0.0
    %1203 = vmatpush1.msra.mxu0 0.0
    %1204 = vmatprep.subr.mxu0 0.0
    %1205 = vmatpush1.msra.mxu0 0.0
    %1206 = vmatprep.subr.mxu0 0.0
    %1207 = vmatpush1.msra.mxu0 0.0
    %1208 = vmatprep.subr.mxu0 0.0
    %1209 = vmatpush1.msra.mxu0 0.0
    %1210 = vmatprep.subr.mxu0 0.0
    %1211 = vmatpush1.msra.mxu0 0.0
    %1212 = vmatprep.subr.mxu0 0.0
    %1213 = vmatpush1.msra.mxu0 0.0
    %1214 = vmatprep.subr.mxu0 0.0
    %1215 = vmatpush1.msra.mxu0 0.0
    %1216 = vmatprep.subr.mxu0 0.0
    %1217 = vmatpush1.msra.mxu0 0.0
    %1218 = vmatprep.subr.mxu0 0.0
    %1219 = vmatpush1.msra.mxu0 0.0
    %1220 = vmatprep.subr.mxu0 0.0
    %1221 = vmatpush1.msra.mxu0 0.0
    %1222 = vmatprep.subr.mxu0 0.0
    %1223 = vmatpush1.msra.mxu0 0.0
    %1224 = vmatprep.subr.mxu0 0.0
    %1225 = vmatpush1.msra.mxu0 0.0
    %1226 = vmatprep.subr.mxu0 0.0
    %1227 = vmatpush1.msra.mxu0 0.0
    %1228 = vmatprep.subr.mxu0 0.0
    %1229 = vmatpush1.msra.mxu0 0.0
    %1230 = vmatprep.subr.mxu0 0.0
    %1231 = vmatpush1.msra.mxu0 0.0
    %1232 = vmatprep.subr.mxu0 0.0
    %1233 = vmatpush1.msra.mxu0 0.0
    %1234 = vmatprep.subr.mxu0 0.0
    %1235 = vmatpush1.msra.mxu0 0.0
    %1236 = vmatprep.subr.mxu0 0.0
    %1237 = vmatpush1.msra.mxu0 0.0
    %1238 = vmatprep.mubr.f32.mxu0 0.0
    %1239 = vmatmul.mubr.f32.gmra.mrb[0].mxu0 %v1169
    %v1240 = vpop.f32.mrb[0].mxu0
    %v1241 = vadd.f32 %v1167, %v1240
    %v1242 = vpop.f32.mrb[0].mxu0
    %1243 = vmatprep.mubr.f32.mxu0 0.0
    %1244 = vmatmul.mubr.f32.gmra.mrb[0].mxu0 %v1172
    %v1245 = vpop.f32.mrb[0].mxu0
    %v1246 = vadd.f32 %v1167, %v1245
    %v1247 = vpop.f32.mrb[0].mxu0
    %1248 = vdwg.mxu0
    %v1249 = vmul.f32 %v1241, 0.35355338
    %v1250 = vmul.f32 %v1246, 0.35355338
    %v1251 = vld [vmem:[%s4 + $0x60] sm:$0xff]
    %v1252 = vld [vmem:[%s4 + $0x68] sm:$0xff]
    %v1253 = vld [vmem:[%s4 + $0x70] sm:$0xff]
    %v1254 = vld [vmem:[%s4 + $0x78] sm:$0xff]
    %v1255 = vld [vmem:[%s4 + $0x118] sm:$0x1]
    %v1256 = vlaneseq
    %v1257 = vshrl.u32 %v1256, 7
    %v1258 = vsub.s32 0, %v1257
    %v1259 = vrot.slane %v1255, %v1258
    %v1261 = vsel %vm27, %v23, 0
    %v1264 = vsel %vm27, %v24, 0
    %1266 = vmatprep.subr.mxu0 0.0
    %1267 = vmatpush1.msra.mxu0 %v1251
    %1268 = vmatprep.subr.mxu0 0.0
    %1269 = vmatpush1.msra.mxu0 %v1252
    %1270 = vmatprep.subr.mxu0 0.0
    %1271 = vmatpush1.msra.mxu0 %v1253
    %1272 = vmatprep.subr.mxu0 0.0
    %1273 = vmatpush1.msra.mxu0 %v1254
    %1274 = vmatprep.subr.mxu0 0.0
    %1275 = vmatpush1.msra.mxu0 0.0
    %1276 = vmatprep.subr.mxu0 0.0
    %1277 = vmatpush1.msra.mxu0 0.0
    %1278 = vmatprep.subr.mxu0 0.0
    %1279 = vmatpush1.msra.mxu0 0.0
    %1280 = vmatprep.subr.mxu0 0.0
    %1281 = vmatpush1.msra.mxu0 0.0
    %1282 = vmatprep.subr.mxu0 0.0
    %1283 = vmatpush1.msra.mxu0 0.0
    %1284 = vmatprep.subr.mxu0 0.0
    %1285 = vmatpush1.msra.mxu0 0.0
    %1286 = vmatprep.subr.mxu0 0.0
    %1287 = vmatpush1.msra.mxu0 0.0
    %1288 = vmatprep.subr.mxu0 0.0
    %1289 = vmatpush1.msra.mxu0 0.0
    %1290 = vmatprep.subr.mxu0 0.0
    %1291 = vmatpush1.msra.mxu0 0.0
    %1292 = vmatprep.subr.mxu0 0.0
    %1293 = vmatpush1.msra.mxu0 0.0
    %1294 = vmatprep.subr.mxu0 0.0
    %1295 = vmatpush1.msra.mxu0 0.0
    %1296 = vmatprep.subr.mxu0 0.0
    %1297 = vmatpush1.msra.mxu0 0.0
    %1298 = vmatprep.subr.mxu0 0.0
    %1299 = vmatpush1.msra.mxu0 0.0
    %1300 = vmatprep.subr.mxu0 0.0
    %1301 = vmatpush1.msra.mxu0 0.0
    %1302 = vmatprep.subr.mxu0 0.0
    %1303 = vmatpush1.msra.mxu0 0.0
    %1304 = vmatprep.subr.mxu0 0.0
    %1305 = vmatpush1.msra.mxu0 0.0
    %1306 = vmatprep.subr.mxu0 0.0
    %1307 = vmatpush1.msra.mxu0 0.0
    %1308 = vmatprep.subr.mxu0 0.0
    %1309 = vmatpush1.msra.mxu0 0.0
    %1310 = vmatprep.subr.mxu0 0.0
    %1311 = vmatpush1.msra.mxu0 0.0
    %1312 = vmatprep.subr.mxu0 0.0
    %1313 = vmatpush1.msra.mxu0 0.0
    %1314 = vmatprep.subr.mxu0 0.0
    %1315 = vmatpush1.msra.mxu0 0.0
    %1316 = vmatprep.subr.mxu0 0.0
    %1317 = vmatpush1.msra.mxu0 0.0
    %1318 = vmatprep.subr.mxu0 0.0
    %1319 = vmatpush1.msra.mxu0 0.0
    %1320 = vmatprep.subr.mxu0 0.0
    %1321 = vmatpush1.msra.mxu0 0.0
    %1322 = vmatprep.subr.mxu0 0.0
    %1323 = vmatpush1.msra.mxu0 0.0
    %1324 = vmatprep.subr.mxu0 0.0
    %1325 = vmatpush1.msra.mxu0 0.0
    %1326 = vmatprep.subr.mxu0 0.0
    %1327 = vmatpush1.msra.mxu0 0.0
    %1328 = vmatprep.subr.mxu0 0.0
    %1329 = vmatpush1.msra.mxu0 0.0
    %1330 = vmatprep.mubr.f32.mxu0 0.0
    %1331 = vmatmul.mubr.f32.gmra.mrb[0].mxu0 %v1261
    %v1332 = vpop.f32.mrb[0].mxu0
    %v1333 = vadd.f32 %v1259, %v1332
    %v1334 = vpop.f32.mrb[0].mxu0
    %1335 = vmatprep.mubr.f32.mxu0 0.0
    %1336 = vmatmul.mubr.f32.gmra.mrb[0].mxu0 %v1264
    %v1337 = vpop.f32.mrb[0].mxu0
    %v1338 = vadd.f32 %v1259, %v1337
    %v1339 = vpop.f32.mrb[0].mxu0
    %1340 = vdwg.mxu0
    %v1341 = vld [vmem:[%s3] sm:$0xff]
    %v1342 = vld [vmem:[%s3 + $0x8] sm:$0xff]
    %v1343 = vld [vmem:[%s4 + $0x80] sm:$0xff]
    %v1344 = vld [vmem:[%s4 + $0x88] sm:$0xff]
    %v1345 = vld [vmem:[%s4 + $0x90] sm:$0xff]
    %v1346 = vld [vmem:[%s4 + $0x98] sm:$0xff]
    %v1347 = vld [vmem:[%s4 + $0x120] sm:$0x1]
    %v1349 = vsel %vm187, %v1249, 0
    %v1352 = vsel %vm187, %v1250, 0
    %v1355 = vsel %vm187, %v1333, 0
    %v1358 = vsel %vm187, %v1338, 0
    %1360 = vmatprep.subr.mxu0 0.0
    %1361 = vmatpush1.xpose.msra.mxu0 %v1355
    %1362 = vmatprep.subr.mxu0 0.0
    %1363 = vmatpush1.xpose.msra.mxu0 %v1358
    %1364 = vmatprep.subr.mxu0 0.0
    %1365 = vmatpush1.xpose.msra.mxu0 0.0
    %1366 = vmatprep.subr.mxu0 0.0
    %1367 = vmatpush1.xpose.msra.mxu0 0.0
    %1368 = vmatprep.subr.mxu0 0.0
    %1369 = vmatpush1.xpose.msra.mxu0 0.0
    %1370 = vmatprep.subr.mxu0 0.0
    %1371 = vmatpush1.xpose.msra.mxu0 0.0
    %1372 = vmatprep.subr.mxu0 0.0
    %1373 = vmatpush1.xpose.msra.mxu0 0.0
    %1374 = vmatprep.subr.mxu0 0.0
    %1375 = vmatpush1.xpose.msra.mxu0 0.0
    %1376 = vmatprep.subr.mxu0 0.0
    %1377 = vmatpush1.xpose.msra.mxu0 0.0
    %1378 = vmatprep.subr.mxu0 0.0
    %1379 = vmatpush1.xpose.msra.mxu0 0.0
    %1380 = vmatprep.subr.mxu0 0.0
    %1381 = vmatpush1.xpose.msra.mxu0 0.0
    %1382 = vmatprep.subr.mxu0 0.0
    %1383 = vmatpush1.xpose.msra.mxu0 0.0
    %1384 = vmatprep.subr.mxu0 0.0
    %1385 = vmatpush1.xpose.msra.mxu0 0.0
    %1386 = vmatprep.subr.mxu0 0.0
    %1387 = vmatpush1.xpose.msra.mxu0 0.0
    %1388 = vmatprep.subr.mxu0 0.0
    %1389 = vmatpush1.xpose.msra.mxu0 0.0
    %1390 = vmatprep.subr.mxu0 0.0
    %1391 = vmatpush1.xpose.msra.mxu0 0.0
    %1392 = vmatprep.subr.mxu0 0.0
    %1393 = vmatpush1.xpose.msra.mxu0 0.0
    %1394 = vmatprep.subr.mxu0 0.0
    %1395 = vmatpush1.xpose.msra.mxu0 0.0
    %1396 = vmatprep.subr.mxu0 0.0
    %1397 = vmatpush1.xpose.msra.mxu0 0.0
    %1398 = vmatprep.subr.mxu0 0.0
    %1399 = vmatpush1.xpose.msra.mxu0 0.0
    %1400 = vmatprep.subr.mxu0 0.0
    %1401 = vmatpush1.xpose.msra.mxu0 0.0
    %1402 = vmatprep.subr.mxu0 0.0
    %1403 = vmatpush1.xpose.msra.mxu0 0.0
    %1404 = vmatprep.subr.mxu0 0.0
    %1405 = vmatpush1.xpose.msra.mxu0 0.0
    %1406 = vmatprep.subr.mxu0 0.0
    %1407 = vmatpush1.xpose.msra.mxu0 0.0
    %1408 = vmatprep.subr.mxu0 0.0
    %1409 = vmatpush1.xpose.msra.mxu0 0.0
    %1410 = vmatprep.subr.mxu0 0.0
    %1411 = vmatpush1.xpose.msra.mxu0 0.0
    %1412 = vmatprep.subr.mxu0 0.0
    %1413 = vmatpush1.xpose.msra.mxu0 0.0
    %1414 = vmatprep.subr.mxu0 0.0
    %1415 = vmatpush1.xpose.msra.mxu0 0.0
    %1416 = vmatprep.subr.mxu0 0.0
    %1417 = vmatpush1.xpose.msra.mxu0 0.0
    %1418 = vmatprep.subr.mxu0 0.0
    %1419 = vmatpush1.xpose.msra.mxu0 0.0
    %1420 = vmatprep.subr.mxu0 0.0
    %1421 = vmatpush1.xpose.msra.mxu0 0.0
    %1422 = vmatprep.subr.mxu0 0.0
    %1423 = vmatpush1.xpose.msra.mxu0 0.0
    %1424 = vmatprep.mubr.f32.mxu0 0.0
    %1425 = vmatmul.mubr.f32.gmra.mrb[0].mxu0 %v1349
    %v1426 = vpop.f32.mrb[0].mxu0
    %v1427 = vadd.f32 %v1341, %v1426
    %v1428 = vpop.f32.mrb[0].mxu0
    %1429 = vmatprep.mubr.f32.mxu0 0.0
    %1430 = vmatmul.mubr.f32.gmra.mrb[0].mxu0 %v1352
    %v1431 = vpop.f32.mrb[0].mxu0
    %v1432 = vadd.f32 %v1342, %v1431
    %v1433 = vpop.f32.mrb[0].mxu0
    %1434 = vdwg.mxu0
    %v1435 = vsel %vm273, %v1427, -inf
    %1436 = vmax.xlane.f32.xlu0 %v1435
    %v1437 = vpop.xlane.xlu0 %1436
    %v1438 = vsel %vm273, %v1432, -inf
    %1439 = vmax.xlane.f32.xlu0 %v1438
    %v1440 = vpop.xlane.xlu0 %1439
    %v1441 = vsub.f32 %v1427, %v1437
    %v1442 = vsub.f32 %v1432, %v1440
    %v1443 = vmul.f32 %v1441, 1.442695
    %v1444 = vpow.pop %v1443
    %v1445 = vmul.f32 %v1442, 1.442695
    %v1446 = vpow.pop %v1445
    %v1447 = vsel %vm273, %v1444, 0.0
    %1448 = vadd.xlane.f32.xlu0 %v1447
    %v1449 = vpop.xlane.xlu0 %1448
    %v1450 = vsel %vm273, %v1446, 0.0
    %1451 = vadd.xlane.f32.xlu0 %v1450
    %v1452 = vpop.xlane.xlu0 %1451
    %v1453 = vrcp.pop %v1449
    %v1454 = vrcp.pop %v1452
    %v1455 = vmul.f32 %v1444, %v1453
    %v1456 = vmul.f32 %v1446, %v1454
    %1457 = vrot.lane.b32.xlu0 %v1333, 96
    %v1458 = vpop.permute.xlu0 %1457
    %1459 = vrot.lane.b32.xlu0 %v1338, 96
    %v1460 = vpop.permute.xlu0 %1459
    %v1464 = vsel %vm273, %v1455, 0
    %v1467 = vsel %vm273, %v1456, 0
    %1469 = vmatprep.subr.mxu0 0.0
    %1470 = vmatpush1.msra.mxu0 %v1458
    %1471 = vmatprep.subr.mxu0 0.0
    %1472 = vmatpush1.msra.mxu0 %v1460
    %1473 = vmatprep.subr.mxu0 0.0
    %1474 = vmatpush1.msra.mxu0 0.0
    %1475 = vmatprep.subr.mxu0 0.0
    %1476 = vmatpush1.msra.mxu0 0.0
    %1477 = vmatprep.subr.mxu0 0.0
    %1478 = vmatpush1.msra.mxu0 0.0
    %1479 = vmatprep.subr.mxu0 0.0
    %1480 = vmatpush1.msra.mxu0 0.0
    %1481 = vmatprep.subr.mxu0 0.0
    %1482 = vmatpush1.msra.mxu0 0.0
    %1483 = vmatprep.subr.mxu0 0.0
    %1484 = vmatpush1.msra.mxu0 0.0
    %1485 = vmatprep.subr.mxu0 0.0
    %1486 = vmatpush1.msra.mxu0 0.0
    %1487 = vmatprep.subr.mxu0 0.0
    %1488 = vmatpush1.msra.mxu0 0.0
    %1489 = vmatprep.subr.mxu0 0.0
    %1490 = vmatpush1.msra.mxu0 0.0
    %1491 = vmatprep.subr.mxu0 0.0
    %1492 = vmatpush1.msra.mxu0 0.0
    %1493 = vmatprep.subr.mxu0 0.0
    %1494 = vmatpush1.msra.mxu0 0.0
    %1495 = vmatprep.subr.mxu0 0.0
    %1496 = vmatpush1.msra.mxu0 0.0
    %1497 = vmatprep.subr.mxu0 0.0
    %1498 = vmatpush1.msra.mxu0 0.0
    %1499 = vmatprep.subr.mxu0 0.0
    %1500 = vmatpush1.msra.mxu0 0.0
    %1501 = vmatprep.subr.mxu0 0.0
    %1502 = vmatpush1.msra.mxu0 0.0
    %1503 = vmatprep.subr.mxu0 0.0
    %1504 = vmatpush1.msra.mxu0 0.0
    %1505 = vmatprep.subr.mxu0 0.0
    %1506 = vmatpush1.msra.mxu0 0.0
    %1507 = vmatprep.subr.mxu0 0.0
    %1508 = vmatpush1.msra.mxu0 0.0
    %1509 = vmatprep.subr.mxu0 0.0
    %1510 = vmatpush1.msra.mxu0 0.0
    %1511 = vmatprep.subr.mxu0 0.0
    %1512 = vmatpush1.msra.mxu0 0.0
    %1513 = vmatprep.subr.mxu0 0.0
    %1514 = vmatpush1.msra.mxu0 0.0
    %1515 = vmatprep.subr.mxu0 0.0
    %1516 = vmatpush1.msra.mxu0 0.0
    %1517 = vmatprep.subr.mxu0 0.0
    %1518 = vmatpush1.msra.mxu0 0.0
    %1519 = vmatprep.subr.mxu0 0.0
    %1520 = vmatpush1.msra.mxu0 0.0
    %1521 = vmatprep.subr.mxu0 0.0
    %1522 = vmatpush1.msra.mxu0 0.0
    %1523 = vmatprep.subr.mxu0 0.0
    %1524 = vmatpush1.msra.mxu0 0.0
    %1525 = vmatprep.subr.mxu0 0.0
    %1526 = vmatpush1.msra.mxu0 0.0
    %1527 = vmatprep.subr.mxu0 0.0
    %1528 = vmatpush1.msra.mxu0 0.0
    %1529 = vmatprep.subr.mxu0 0.0
    %1530 = vmatpush1.msra.mxu0 0.0
    %1531 = vmatprep.subr.mxu0 0.0
    %1532 = vmatpush1.msra.mxu0 0.0
    %1533 = vmatprep.mubr.f32.mxu0 0.0
    %1534 = vmatmul.mubr.f32.gmra.mrb[0].mxu0 %v1464
    %v1535 = vpop.f32.mrb[0].mxu0
    %v1536 = vadd.f32 0.0, %v1535
    %v1537 = vpop.f32.mrb[0].mxu0
    %1538 = vmatprep.mubr.f32.mxu0 0.0
    %1539 = vmatmul.mubr.f32.gmra.mrb[0].mxu0 %v1467
    %v1540 = vpop.f32.mrb[0].mxu0
    %v1541 = vadd.f32 0.0, %v1540
    %v1542 = vpop.f32.mrb[0].mxu0
    %1543 = vdwg.mxu0
    %1544 = vst.msk [vmem:[#allocation2] sm:$0xff] %vm187, %v1536
    %1545 = vst.msk [vmem:[#allocation2 + $0x8] sm:$0xff] %vm187, %v1541
    %1546 = vrot.lane.b32.xlu0 %v1249, 120
    %v1547 = vpop.permute.xlu0 %1546
    %1548 = vrot.lane.b32.xlu0 %v1250, 120
    %v1549 = vpop.permute.xlu0 %1548
    %1550 = vrot.lane.b32.xlu0 %v1333, 120
    %v1551 = vpop.permute.xlu0 %1550
    %1552 = vrot.lane.b32.xlu0 %v1338, 120
    %v1553 = vpop.permute.xlu0 %1552
    %v1554 = vsel %vm187, %v1547, 0
    %v1556 = vsel %vm187, %v1549, 0
    %v1558 = vsel %vm187, %v1551, 0
    %v1560 = vsel %vm187, %v1553, 0
    %1562 = vmatprep.subr.mxu0 0.0
    %1563 = vmatpush1.xpose.msra.mxu0 %v1558
    %1564 = vmatprep.subr.mxu0 0.0
    %1565 = vmatpush1.xpose.msra.mxu0 %v1560
    %1566 = vmatprep.subr.mxu0 0.0
    %1567 = vmatpush1.xpose.msra.mxu0 0.0
    %1568 = vmatprep.subr.mxu0 0.0
    %1569 = vmatpush1.xpose.msra.mxu0 0.0
    %1570 = vmatprep.subr.mxu0 0.0
    %1571 = vmatpush1.xpose.msra.mxu0 0.0
    %1572 = vmatprep.subr.mxu0 0.0
    %1573 = vmatpush1.xpose.msra.mxu0 0.0
    %1574 = vmatprep.subr.mxu0 0.0
    %1575 = vmatpush1.xpose.msra.mxu0 0.0
    %1576 = vmatprep.subr.mxu0 0.0
    %1577 = vmatpush1.xpose.msra.mxu0 0.0
    %1578 = vmatprep.subr.mxu0 0.0
    %1579 = vmatpush1.xpose.msra.mxu0 0.0
    %1580 = vmatprep.subr.mxu0 0.0
    %1581 = vmatpush1.xpose.msra.mxu0 0.0
    %1582 = vmatprep.subr.mxu0 0.0
    %1583 = vmatpush1.xpose.msra.mxu0 0.0
    %1584 = vmatprep.subr.mxu0 0.0
    %1585 = vmatpush1.xpose.msra.mxu0 0.0
    %1586 = vmatprep.subr.mxu0 0.0
    %1587 = vmatpush1.xpose.msra.mxu0 0.0
    %1588 = vmatprep.subr.mxu0 0.0
    %1589 = vmatpush1.xpose.msra.mxu0 0.0
    %1590 = vmatprep.subr.mxu0 0.0
    %1591 = vmatpush1.xpose.msra.mxu0 0.0
    %1592 = vmatprep.subr.mxu0 0.0
    %1593 = vmatpush1.xpose.msra.mxu0 0.0
    %1594 = vmatprep.subr.mxu0 0.0
    %1595 = vmatpush1.xpose.msra.mxu0 0.0
    %1596 = vmatprep.subr.mxu0 0.0
    %1597 = vmatpush1.xpose.msra.mxu0 0.0
    %1598 = vmatprep.subr.mxu0 0.0
    %1599 = vmatpush1.xpose.msra.mxu0 0.0
    %1600 = vmatprep.subr.mxu0 0.0
    %1601 = vmatpush1.xpose.msra.mxu0 0.0
    %1602 = vmatprep.subr.mxu0 0.0
    %1603 = vmatpush1.xpose.msra.mxu0 0.0
    %1604 = vmatprep.subr.mxu0 0.0
    %1605 = vmatpush1.xpose.msra.mxu0 0.0
    %1606 = vmatprep.subr.mxu0 0.0
    %1607 = vmatpush1.xpose.msra.mxu0 0.0
    %1608 = vmatprep.subr.mxu0 0.0
    %1609 = vmatpush1.xpose.msra.mxu0 0.0
    %1610 = vmatprep.subr.mxu0 0.0
    %1611 = vmatpush1.xpose.msra.mxu0 0.0
    %1612 = vmatprep.subr.mxu0 0.0
    %1613 = vmatpush1.xpose.msra.mxu0 0.0
    %1614 = vmatprep.subr.mxu0 0.0
    %1615 = vmatpush1.xpose.msra.mxu0 0.0
    %1616 = vmatprep.subr.mxu0 0.0
    %1617 = vmatpush1.xpose.msra.mxu0 0.0
    %1618 = vmatprep.subr.mxu0 0.0
    %1619 = vmatpush1.xpose.msra.mxu0 0.0
    %1620 = vmatprep.subr.mxu0 0.0
    %1621 = vmatpush1.xpose.msra.mxu0 0.0
    %1622 = vmatprep.subr.mxu0 0.0
    %1623 = vmatpush1.xpose.msra.mxu0 0.0
    %1624 = vmatprep.subr.mxu0 0.0
    %1625 = vmatpush1.xpose.msra.mxu0 0.0
    %1626 = vmatprep.mubr.f32.mxu0 0.0
    %1627 = vmatmul.mubr.f32.gmra.mrb[0].mxu0 %v1554
    %v1628 = vpop.f32.mrb[0].mxu0
    %v1629 = vadd.f32 %v1341, %v1628
    %v1630 = vpop.f32.mrb[0].mxu0
    %1631 = vmatprep.mubr.f32.mxu0 0.0
    %1632 = vmatmul.mubr.f32.gmra.mrb[0].mxu0 %v1556
    %v1633 = vpop.f32.mrb[0].mxu0
    %v1634 = vadd.f32 %v1342, %v1633
    %v1635 = vpop.f32.mrb[0].mxu0
    %1636 = vdwg.mxu0
    %v1637 = vsel %vm273, %v1629, -inf
    %1638 = vmax.xlane.f32.xlu0 %v1637
    %v1639 = vpop.xlane.xlu0 %1638
    %v1640 = vsel %vm273, %v1634, -inf
    %1641 = vmax.xlane.f32.xlu0 %v1640
    %v1642 = vpop.xlane.xlu0 %1641
    %v1643 = vsub.f32 %v1629, %v1639
    %v1644 = vsub.f32 %v1634, %v1642
    %v1645 = vmul.f32 %v1643, 1.442695
    %v1646 = vpow.pop %v1645
    %v1647 = vmul.f32 %v1644, 1.442695
    %v1648 = vpow.pop %v1647
    %v1649 = vsel %vm273, %v1646, 0.0
    %1650 = vadd.xlane.f32.xlu0 %v1649
    %v1651 = vpop.xlane.xlu0 %1650
    %v1652 = vsel %vm273, %v1648, 0.0
    %1653 = vadd.xlane.f32.xlu0 %v1652
    %v1654 = vpop.xlane.xlu0 %1653
    %v1655 = vrcp.pop %v1651
    %v1656 = vrcp.pop %v1654
    %v1657 = vmul.f32 %v1646, %v1655
    %v1658 = vmul.f32 %v1648, %v1656
    %1659 = vrot.lane.b32.xlu0 %v1333, 88
    %v1660 = vpop.permute.xlu0 %1659
    %1661 = vrot.lane.b32.xlu0 %v1338, 88
    %v1662 = vpop.permute.xlu0 %1661
    %v1666 = vsel %vm273, %v1657, 0
    %v1669 = vsel %vm273, %v1658, 0
    %1671 = vmatprep.subr.mxu0 0.0
    %1672 = vmatpush1.msra.mxu0 %v1660
    %1673 = vmatprep.subr.mxu0 0.0
    %1674 = vmatpush1.msra.mxu0 %v1662
    %1675 = vmatprep.subr.mxu0 0.0
    %1676 = vmatpush1.msra.mxu0 0.0
    %1677 = vmatprep.subr.mxu0 0.0
    %1678 = vmatpush1.msra.mxu0 0.0
    %1679 = vmatprep.subr.mxu0 0.0
    %1680 = vmatpush1.msra.mxu0 0.0
    %1681 = vmatprep.subr.mxu0 0.0
    %1682 = vmatpush1.msra.mxu0 0.0
    %1683 = vmatprep.subr.mxu0 0.0
    %1684 = vmatpush1.msra.mxu0 0.0
    %1685 = vmatprep.subr.mxu0 0.0
    %1686 = vmatpush1.msra.mxu0 0.0
    %1687 = vmatprep.subr.mxu0 0.0
    %1688 = vmatpush1.msra.mxu0 0.0
    %1689 = vmatprep.subr.mxu0 0.0
    %1690 = vmatpush1.msra.mxu0 0.0
    %1691 = vmatprep.subr.mxu0 0.0
    %1692 = vmatpush1.msra.mxu0 0.0
    %1693 = vmatprep.subr.mxu0 0.0
    %1694 = vmatpush1.msra.mxu0 0.0
    %1695 = vmatprep.subr.mxu0 0.0
    %1696 = vmatpush1.msra.mxu0 0.0
    %1697 = vmatprep.subr.mxu0 0.0
    %1698 = vmatpush1.msra.mxu0 0.0
    %1699 = vmatprep.subr.mxu0 0.0
    %1700 = vmatpush1.msra.mxu0 0.0
    %1701 = vmatprep.subr.mxu0 0.0
    %1702 = vmatpush1.msra.mxu0 0.0
    %1703 = vmatprep.subr.mxu0 0.0
    %1704 = vmatpush1.msra.mxu0 0.0
    %1705 = vmatprep.subr.mxu0 0.0
    %1706 = vmatpush1.msra.mxu0 0.0
    %1707 = vmatprep.subr.mxu0 0.0
    %1708 = vmatpush1.msra.mxu0 0.0
    %1709 = vmatprep.subr.mxu0 0.0
    %1710 = vmatpush1.msra.mxu0 0.0
    %1711 = vmatprep.subr.mxu0 0.0
    %1712 = vmatpush1.msra.mxu0 0.0
    %1713 = vmatprep.subr.mxu0 0.0
    %1714 = vmatpush1.msra.mxu0 0.0
    %1715 = vmatprep.subr.mxu0 0.0
    %1716 = vmatpush1.msra.mxu0 0.0
    %1717 = vmatprep.subr.mxu0 0.0
    %1718 = vmatpush1.msra.mxu0 0.0
    %1719 = vmatprep.subr.mxu0 0.0
    %1720 = vmatpush1.msra.mxu0 0.0
    %1721 = vmatprep.subr.mxu0 0.0
    %1722 = vmatpush1.msra.mxu0 0.0
    %1723 = vmatprep.subr.mxu0 0.0
    %1724 = vmatpush1.msra.mxu0 0.0
    %1725 = vmatprep.subr.mxu0 0.0
    %1726 = vmatpush1.msra.mxu0 0.0
    %1727 = vmatprep.subr.mxu0 0.0
    %1728 = vmatpush1.msra.mxu0 0.0
    %1729 = vmatprep.subr.mxu0 0.0
    %1730 = vmatpush1.msra.mxu0 0.0
    %1731 = vmatprep.subr.mxu0 0.0
    %1732 = vmatpush1.msra.mxu0 0.0
    %1733 = vmatprep.subr.mxu0 0.0
    %1734 = vmatpush1.msra.mxu0 0.0
    %1735 = vmatprep.mubr.f32.mxu0 0.0
    %1736 = vmatmul.mubr.f32.gmra.mrb[0].mxu0 %v1666
    %v1737 = vpop.f32.mrb[0].mxu0
    %v1738 = vadd.f32 0.0, %v1737
    %v1739 = vpop.f32.mrb[0].mxu0
    %1740 = vmatprep.mubr.f32.mxu0 0.0
    %1741 = vmatmul.mubr.f32.gmra.mrb[0].mxu0 %v1669
    %v1742 = vpop.f32.mrb[0].mxu0
    %v1743 = vadd.f32 0.0, %v1742
    %v1744 = vpop.f32.mrb[0].mxu0
    %1745 = vdwg.mxu0
    %1748 = vrot.lane.b32.xlu0 %v1738, 8
    %v1749 = vpop.permute.xlu0 %1748
    %1750 = vrot.lane.b32.xlu0 %v1743, 8
    %v1751 = vpop.permute.xlu0 %1750
    %1754 = vst.msk [vmem:[#allocation2] sm:$0xff] %vm593, %v1749
    %1755 = vst.msk [vmem:[#allocation2 + $0x8] sm:$0xff] %vm593, %v1751
    %1756 = vrot.lane.b32.xlu0 %v1249, 112
    %v1757 = vpop.permute.xlu0 %1756
    %1758 = vrot.lane.b32.xlu0 %v1250, 112
    %v1759 = vpop.permute.xlu0 %1758
    %1760 = vrot.lane.b32.xlu0 %v1333, 112
    %v1761 = vpop.permute.xlu0 %1760
    %1762 = vrot.lane.b32.xlu0 %v1338, 112
    %v1763 = vpop.permute.xlu0 %1762
    %v1764 = vsel %vm187, %v1757, 0
    %v1766 = vsel %vm187, %v1759, 0
    %v1768 = vsel %vm187, %v1761, 0
    %v1770 = vsel %vm187, %v1763, 0
    %1772 = vmatprep.subr.mxu0 0.0
    %1773 = vmatpush1.xpose.msra.mxu0 %v1768
    %1774 = vmatprep.subr.mxu0 0.0
    %1775 = vmatpush1.xpose.msra.mxu0 %v1770
    %1776 = vmatprep.subr.mxu0 0.0
    %1777 = vmatpush1.xpose.msra.mxu0 0.0
    %1778 = vmatprep.subr.mxu0 0.0
    %1779 = vmatpush1.xpose.msra.mxu0 0.0
    %1780 = vmatprep.subr.mxu0 0.0
    %1781 = vmatpush1.xpose.msra.mxu0 0.0
    %1782 = vmatprep.subr.mxu0 0.0
    %1783 = vmatpush1.xpose.msra.mxu0 0.0
    %1784 = vmatprep.subr.mxu0 0.0
    %1785 = vmatpush1.xpose.msra.mxu0 0.0
    %1786 = vmatprep.subr.mxu0 0.0
    %1787 = vmatpush1.xpose.msra.mxu0 0.0
    %1788 = vmatprep.subr.mxu0 0.0
    %1789 = vmatpush1.xpose.msra.mxu0 0.0
    %1790 = vmatprep.subr.mxu0 0.0
    %1791 = vmatpush1.xpose.msra.mxu0 0.0
    %1792 = vmatprep.subr.mxu0 0.0
    %1793 = vmatpush1.xpose.msra.mxu0 0.0
    %1794 = vmatprep.subr.mxu0 0.0
    %1795 = vmatpush1.xpose.msra.mxu0 0.0
    %1796 = vmatprep.subr.mxu0 0.0
    %1797 = vmatpush1.xpose.msra.mxu0 0.0
    %1798 = vmatprep.subr.mxu0 0.0
    %1799 = vmatpush1.xpose.msra.mxu0 0.0
    %1800 = vmatprep.subr.mxu0 0.0
    %1801 = vmatpush1.xpose.msra.mxu0 0.0
    %1802 = vmatprep.subr.mxu0 0.0
    %1803 = vmatpush1.xpose.msra.mxu0 0.0
    %1804 = vmatprep.subr.mxu0 0.0
    %1805 = vmatpush1.xpose.msra.mxu0 0.0
    %1806 = vmatprep.subr.mxu0 0.0
    %1807 = vmatpush1.xpose.msra.mxu0 0.0
    %1808 = vmatprep.subr.mxu0 0.0
    %1809 = vmatpush1.xpose.msra.mxu0 0.0
    %1810 = vmatprep.subr.mxu0 0.0
    %1811 = vmatpush1.xpose.msra.mxu0 0.0
    %1812 = vmatprep.subr.mxu0 0.0
    %1813 = vmatpush1.xpose.msra.mxu0 0.0
    %1814 = vmatprep.subr.mxu0 0.0
    %1815 = vmatpush1.xpose.msra.mxu0 0.0
    %1816 = vmatprep.subr.mxu0 0.0
    %1817 = vmatpush1.xpose.msra.mxu0 0.0
    %1818 = vmatprep.subr.mxu0 0.0
    %1819 = vmatpush1.xpose.msra.mxu0 0.0
    %1820 = vmatprep.subr.mxu0 0.0
    %1821 = vmatpush1.xpose.msra.mxu0 0.0
    %1822 = vmatprep.subr.mxu0 0.0
    %1823 = vmatpush1.xpose.msra.mxu0 0.0
    %1824 = vmatprep.subr.mxu0 0.0
    %1825 = vmatpush1.xpose.msra.mxu0 0.0
    %1826 = vmatprep.subr.mxu0 0.0
    %1827 = vmatpush1.xpose.msra.mxu0 0.0
    %1828 = vmatprep.subr.mxu0 0.0
    %1829 = vmatpush1.xpose.msra.mxu0 0.0
    %1830 = vmatprep.subr.mxu0 0.0
    %1831 = vmatpush1.xpose.msra.mxu0 0.0
    %1832 = vmatprep.subr.mxu0 0.0
    %1833 = vmatpush1.xpose.msra.mxu0 0.0
    %1834 = vmatprep.subr.mxu0 0.0
    %1835 = vmatpush1.xpose.msra.mxu0 0.0
    %1836 = vmatprep.mubr.f32.mxu0 0.0
    %1837 = vmatmul.mubr.f32.gmra.mrb[0].mxu0 %v1764
    %v1838 = vpop.f32.mrb[0].mxu0
    %v1839 = vadd.f32 %v1341, %v1838
    %v1840 = vpop.f32.mrb[0].mxu0
    %1841 = vmatprep.mubr.f32.mxu0 0.0
    %1842 = vmatmul.mubr.f32.gmra.mrb[0].mxu0 %v1766
    %v1843 = vpop.f32.mrb[0].mxu0
    %v1844 = vadd.f32 %v1342, %v1843
    %v1845 = vpop.f32.mrb[0].mxu0
    %1846 = vdwg.mxu0
    %v1847 = vsel %vm273, %v1839, -inf
    %1848 = vmax.xlane.f32.xlu0 %v1847
    %v1849 = vpop.xlane.xlu0 %1848
    %v1850 = vsel %vm273, %v1844, -inf
    %1851 = vmax.xlane.f32.xlu0 %v1850
    %v1852 = vpop.xlane.xlu0 %1851
    %v1853 = vsub.f32 %v1839, %v1849
    %v1854 = vsub.f32 %v1844, %v1852
    %v1855 = vmul.f32 %v1853, 1.442695
    %v1856 = vpow.pop %v1855
    %v1857 = vmul.f32 %v1854, 1.442695
    %v1858 = vpow.pop %v1857
    %v1859 = vsel %vm273, %v1856, 0.0
    %1860 = vadd.xlane.f32.xlu0 %v1859
    %v1861 = vpop.xlane.xlu0 %1860
    %v1862 = vsel %vm273, %v1858, 0.0
    %1863 = vadd.xlane.f32.xlu0 %v1862
    %v1864 = vpop.xlane.xlu0 %1863
    %v1865 = vrcp.pop %v1861
    %v1866 = vrcp.pop %v1864
    %v1867 = vmul.f32 %v1856, %v1865
    %v1868 = vmul.f32 %v1858, %v1866
    %1869 = vrot.lane.b32.xlu0 %v1333, 80
    %v1870 = vpop.permute.xlu0 %1869
    %1871 = vrot.lane.b32.xlu0 %v1338, 80
    %v1872 = vpop.permute.xlu0 %1871
    %v1876 = vsel %vm273, %v1867, 0
    %v1879 = vsel %vm273, %v1868, 0
    %1881 = vmatprep.subr.mxu0 0.0
    %1882 = vmatpush1.msra.mxu0 %v1870
    %1883 = vmatprep.subr.mxu0 0.0
    %1884 = vmatpush1.msra.mxu0 %v1872
    %1885 = vmatprep.subr.mxu0 0.0
    %1886 = vmatpush1.msra.mxu0 0.0
    %1887 = vmatprep.subr.mxu0 0.0
    %1888 = vmatpush1.msra.mxu0 0.0
    %1889 = vmatprep.subr.mxu0 0.0
    %1890 = vmatpush1.msra.mxu0 0.0
    %1891 = vmatprep.subr.mxu0 0.0
    %1892 = vmatpush1.msra.mxu0 0.0
    %1893 = vmatprep.subr.mxu0 0.0
    %1894 = vmatpush1.msra.mxu0 0.0
    %1895 = vmatprep.subr.mxu0 0.0
    %1896 = vmatpush1.msra.mxu0 0.0
    %1897 = vmatprep.subr.mxu0 0.0
    %1898 = vmatpush1.msra.mxu0 0.0
    %1899 = vmatprep.subr.mxu0 0.0
    %1900 = vmatpush1.msra.mxu0 0.0
    %1901 = vmatprep.subr.mxu0 0.0
    %1902 = vmatpush1.msra.mxu0 0.0
    %1903 = vmatprep.subr.mxu0 0.0
    %1904 = vmatpush1.msra.mxu0 0.0
    %1905 = vmatprep.subr.mxu0 0.0
    %1906 = vmatpush1.msra.mxu0 0.0
    %1907 = vmatprep.subr.mxu0 0.0
    %1908 = vmatpush1.msra.mxu0 0.0
    %1909 = vmatprep.subr.mxu0 0.0
    %1910 = vmatpush1.msra.mxu0 0.0
    %1911 = vmatprep.subr.mxu0 0.0
    %1912 = vmatpush1.msra.mxu0 0.0
    %1913 = vmatprep.subr.mxu0 0.0
    %1914 = vmatpush1.msra.mxu0 0.0
    %1915 = vmatprep.subr.mxu0 0.0
    %1916 = vmatpush1.msra.mxu0 0.0
    %1917 = vmatprep.subr.mxu0 0.0
    %1918 = vmatpush1.msra.mxu0 0.0
    %1919 = vmatprep.subr.mxu0 0.0
    %1920 = vmatpush1.msra.mxu0 0.0
    %1921 = vmatprep.subr.mxu0 0.0
    %1922 = vmatpush1.msra.mxu0 0.0
    %1923 = vmatprep.subr.mxu0 0.0
    %1924 = vmatpush1.msra.mxu0 0.0
    %1925 = vmatprep.subr.mxu0 0.0
    %1926 = vmatpush1.msra.mxu0 0.0
    %1927 = vmatprep.subr.mxu0 0.0
    %1928 = vmatpush1.msra.mxu0 0.0
    %1929 = vmatprep.subr.mxu0 0.0
    %1930 = vmatpush1.msra.mxu0 0.0
    %1931 = vmatprep.subr.mxu0 0.0
    %1932 = vmatpush1.msra.mxu0 0.0
    %1933 = vmatprep.subr.mxu0 0.0
    %1934 = vmatpush1.msra.mxu0 0.0
    %1935 = vmatprep.subr.mxu0 0.0
    %1936 = vmatpush1.msra.mxu0 0.0
    %1937 = vmatprep.subr.mxu0 0.0
    %1938 = vmatpush1.msra.mxu0 0.0
    %1939 = vmatprep.subr.mxu0 0.0
    %1940 = vmatpush1.msra.mxu0 0.0
    %1941 = vmatprep.subr.mxu0 0.0
    %1942 = vmatpush1.msra.mxu0 0.0
    %1943 = vmatprep.subr.mxu0 0.0
    %1944 = vmatpush1.msra.mxu0 0.0
    %1945 = vmatprep.mubr.f32.mxu0 0.0
    %1946 = vmatmul.mubr.f32.gmra.mrb[0].mxu0 %v1876
    %v1947 = vpop.f32.mrb[0].mxu0
    %v1948 = vadd.f32 0.0, %v1947
    %v1949 = vpop.f32.mrb[0].mxu0
    %1950 = vmatprep.mubr.f32.mxu0 0.0
    %1951 = vmatmul.mubr.f32.gmra.mrb[0].mxu0 %v1879
    %v1952 = vpop.f32.mrb[0].mxu0
    %v1953 = vadd.f32 0.0, %v1952
    %v1954 = vpop.f32.mrb[0].mxu0
    %1955 = vdwg.mxu0
    %1958 = vrot.lane.b32.xlu0 %v1948, 16
    %v1959 = vpop.permute.xlu0 %1958
    %1960 = vrot.lane.b32.xlu0 %v1953, 16
    %v1961 = vpop.permute.xlu0 %1960
    %1964 = vst.msk [vmem:[#allocation2] sm:$0xff] %vm804, %v1959
    %1965 = vst.msk [vmem:[#allocation2 + $0x8] sm:$0xff] %vm804, %v1961
    %1966 = vrot.lane.b32.xlu0 %v1249, 104
    %v1967 = vpop.permute.xlu0 %1966
    %1968 = vrot.lane.b32.xlu0 %v1250, 104
    %v1969 = vpop.permute.xlu0 %1968
    %1970 = vrot.lane.b32.xlu0 %v1333, 104
    %v1971 = vpop.permute.xlu0 %1970
    %1972 = vrot.lane.b32.xlu0 %v1338, 104
    %v1973 = vpop.permute.xlu0 %1972
    %v1974 = vsel %vm187, %v1967, 0
    %v1976 = vsel %vm187, %v1969, 0
    %v1978 = vsel %vm187, %v1971, 0
    %v1980 = vsel %vm187, %v1973, 0
    %1982 = vmatprep.subr.mxu0 0.0
    %1983 = vmatpush1.xpose.msra.mxu0 %v1978
    %1984 = vmatprep.subr.mxu0 0.0
    %1985 = vmatpush1.xpose.msra.mxu0 %v1980
    %1986 = vmatprep.subr.mxu0 0.0
    %1987 = vmatpush1.xpose.msra.mxu0 0.0
    %1988 = vmatprep.subr.mxu0 0.0
    %1989 = vmatpush1.xpose.msra.mxu0 0.0
    %1990 = vmatprep.subr.mxu0 0.0
    %1991 = vmatpush1.xpose.msra.mxu0 0.0
    %1992 = vmatprep.subr.mxu0 0.0
    %1993 = vmatpush1.xpose.msra.mxu0 0.0
    %1994 = vmatprep.subr.mxu0 0.0
    %1995 = vmatpush1.xpose.msra.mxu0 0.0
    %1996 = vmatprep.subr.mxu0 0.0
    %1997 = vmatpush1.xpose.msra.mxu0 0.0
    %1998 = vmatprep.subr.mxu0 0.0
    %1999 = vmatpush1.xpose.msra.mxu0 0.0
    %2000 = vmatprep.subr.mxu0 0.0
    %2001 = vmatpush1.xpose.msra.mxu0 0.0
    %2002 = vmatprep.subr.mxu0 0.0
    %2003 = vmatpush1.xpose.msra.mxu0 0.0
    %2004 = vmatprep.subr.mxu0 0.0
    %2005 = vmatpush1.xpose.msra.mxu0 0.0
    %2006 = vmatprep.subr.mxu0 0.0
    %2007 = vmatpush1.xpose.msra.mxu0 0.0
    %2008 = vmatprep.subr.mxu0 0.0
    %2009 = vmatpush1.xpose.msra.mxu0 0.0
    %2010 = vmatprep.subr.mxu0 0.0
    %2011 = vmatpush1.xpose.msra.mxu0 0.0
    %2012 = vmatprep.subr.mxu0 0.0
    %2013 = vmatpush1.xpose.msra.mxu0 0.0
    %2014 = vmatprep.subr.mxu0 0.0
    %2015 = vmatpush1.xpose.msra.mxu0 0.0
    %2016 = vmatprep.subr.mxu0 0.0
    %2017 = vmatpush1.xpose.msra.mxu0 0.0
    %2018 = vmatprep.subr.mxu0 0.0
    %2019 = vmatpush1.xpose.msra.mxu0 0.0
    %2020 = vmatprep.subr.mxu0 0.0
    %2021 = vmatpush1.xpose.msra.mxu0 0.0
    %2022 = vmatprep.subr.mxu0 0.0
    %2023 = vmatpush1.xpose.msra.mxu0 0.0
    %2024 = vmatprep.subr.mxu0 0.0
    %2025 = vmatpush1.xpose.msra.mxu0 0.0
    %2026 = vmatprep.subr.mxu0 0.0
    %2027 = vmatpush1.xpose.msra.mxu0 0.0
    %2028 = vmatprep.subr.mxu0 0.0
    %2029 = vmatpush1.xpose.msra.mxu0 0.0
    %2030 = vmatprep.subr.mxu0 0.0
    %2031 = vmatpush1.xpose.msra.mxu0 0.0
    %2032 = vmatprep.subr.mxu0 0.0
    %2033 = vmatpush1.xpose.msra.mxu0 0.0
    %2034 = vmatprep.subr.mxu0 0.0
    %2035 = vmatpush1.xpose.msra.mxu0 0.0
    %2036 = vmatprep.subr.mxu0 0.0
    %2037 = vmatpush1.xpose.msra.mxu0 0.0
    %2038 = vmatprep.subr.mxu0 0.0
    %2039 = vmatpush1.xpose.msra.mxu0 0.0
    %2040 = vmatprep.subr.mxu0 0.0
    %2041 = vmatpush1.xpose.msra.mxu0 0.0
    %2042 = vmatprep.subr.mxu0 0.0
    %2043 = vmatpush1.xpose.msra.mxu0 0.0
    %2044 = vmatprep.subr.mxu0 0.0
    %2045 = vmatpush1.xpose.msra.mxu0 0.0
    %2046 = vmatprep.mubr.f32.mxu0 0.0
    %2047 = vmatmul.mubr.f32.gmra.mrb[0].mxu0 %v1974
    %v2048 = vpop.f32.mrb[0].mxu0
    %v2049 = vadd.f32 %v1341, %v2048
    %v2050 = vpop.f32.mrb[0].mxu0
    %2051 = vmatprep.mubr.f32.mxu0 0.0
    %2052 = vmatmul.mubr.f32.gmra.mrb[0].mxu0 %v1976
    %v2053 = vpop.f32.mrb[0].mxu0
    %v2054 = vadd.f32 %v1342, %v2053
    %v2055 = vpop.f32.mrb[0].mxu0
    %2056 = vdwg.mxu0
    %v2057 = vsel %vm273, %v2049, -inf
    %2058 = vmax.xlane.f32.xlu0 %v2057
    %v2059 = vpop.xlane.xlu0 %2058
    %v2060 = vsel %vm273, %v2054, -inf
    %2061 = vmax.xlane.f32.xlu0 %v2060
    %v2062 = vpop.xlane.xlu0 %2061
    %v2063 = vsub.f32 %v2049, %v2059
    %v2064 = vsub.f32 %v2054, %v2062
    %v2065 = vmul.f32 %v2063, 1.442695
    %v2066 = vpow.pop %v2065
    %v2067 = vmul.f32 %v2064, 1.442695
    %v2068 = vpow.pop %v2067
    %v2069 = vsel %vm273, %v2066, 0.0
    %2070 = vadd.xlane.f32.xlu0 %v2069
    %v2071 = vpop.xlane.xlu0 %2070
    %v2072 = vsel %vm273, %v2068, 0.0
    %2073 = vadd.xlane.f32.xlu0 %v2072
    %v2074 = vpop.xlane.xlu0 %2073
    %v2075 = vrcp.pop %v2071
    %v2076 = vrcp.pop %v2074
    %v2077 = vmul.f32 %v2066, %v2075
    %v2078 = vmul.f32 %v2068, %v2076
    %2079 = vrot.lane.b32.xlu0 %v1333, 72
    %v2080 = vpop.permute.xlu0 %2079
    %2081 = vrot.lane.b32.xlu0 %v1338, 72
    %v2082 = vpop.permute.xlu0 %2081
    %v2086 = vsel %vm273, %v2077, 0
    %v2089 = vsel %vm273, %v2078, 0
    %2091 = vmatprep.subr.mxu0 0.0
    %2092 = vmatpush1.msra.mxu0 %v2080
    %2093 = vmatprep.subr.mxu0 0.0
    %2094 = vmatpush1.msra.mxu0 %v2082
    %2095 = vmatprep.subr.mxu0 0.0
    %2096 = vmatpush1.msra.mxu0 0.0
    %2097 = vmatprep.subr.mxu0 0.0
    %2098 = vmatpush1.msra.mxu0 0.0
    %2099 = vmatprep.subr.mxu0 0.0
    %2100 = vmatpush1.msra.mxu0 0.0
    %2101 = vmatprep.subr.mxu0 0.0
    %2102 = vmatpush1.msra.mxu0 0.0
    %2103 = vmatprep.subr.mxu0 0.0
    %2104 = vmatpush1.msra.mxu0 0.0
    %2105 = vmatprep.subr.mxu0 0.0
    %2106 = vmatpush1.msra.mxu0 0.0
    %2107 = vmatprep.subr.mxu0 0.0
    %2108 = vmatpush1.msra.mxu0 0.0
    %2109 = vmatprep.subr.mxu0 0.0
    %2110 = vmatpush1.msra.mxu0 0.0
    %2111 = vmatprep.subr.mxu0 0.0
    %2112 = vmatpush1.msra.mxu0 0.0
    %2113 = vmatprep.subr.mxu0 0.0
    %2114 = vmatpush1.msra.mxu0 0.0
    %2115 = vmatprep.subr.mxu0 0.0
    %2116 = vmatpush1.msra.mxu0 0.0
    %2117 = vmatprep.subr.mxu0 0.0
    %2118 = vmatpush1.msra.mxu0 0.0
    %2119 = vmatprep.subr.mxu0 0.0
    %2120 = vmatpush1.msra.mxu0 0.0
    %2121 = vmatprep.subr.mxu0 0.0
    %2122 = vmatpush1.msra.mxu0 0.0
    %2123 = vmatprep.subr.mxu0 0.0
    %2124 = vmatpush1.msra.mxu0 0.0
    %2125 = vmatprep.subr.mxu0 0.0
    %2126 = vmatpush1.msra.mxu0 0.0
    %2127 = vmatprep.subr.mxu0 0.0
    %2128 = vmatpush1.msra.mxu0 0.0
    %2129 = vmatprep.subr.mxu0 0.0
    %2130 = vmatpush1.msra.mxu0 0.0
    %2131 = vmatprep.subr.mxu0 0.0
    %2132 = vmatpush1.msra.mxu0 0.0
    %2133 = vmatprep.subr.mxu0 0.0
    %2134 = vmatpush1.msra.mxu0 0.0
    %2135 = vmatprep.subr.mxu0 0.0
    %2136 = vmatpush1.msra.mxu0 0.0
    %2137 = vmatprep.subr.mxu0 0.0
    %2138 = vmatpush1.msra.mxu0 0.0
    %2139 = vmatprep.subr.mxu0 0.0
    %2140 = vmatpush1.msra.mxu0 0.0
    %2141 = vmatprep.subr.mxu0 0.0
    %2142 = vmatpush1.msra.mxu0 0.0
    %2143 = vmatprep.subr.mxu0 0.0
    %2144 = vmatpush1.msra.mxu0 0.0
    %2145 = vmatprep.subr.mxu0 0.0
    %2146 = vmatpush1.msra.mxu0 0.0
    %2147 = vmatprep.subr.mxu0 0.0
    %2148 = vmatpush1.msra.mxu0 0.0
    %2149 = vmatprep.subr.mxu0 0.0
    %2150 = vmatpush1.msra.mxu0 0.0
    %2151 = vmatprep.subr.mxu0 0.0
    %2152 = vmatpush1.msra.mxu0 0.0
    %2153 = vmatprep.subr.mxu0 0.0
    %2154 = vmatpush1.msra.mxu0 0.0
    %2155 = vmatprep.mubr.f32.mxu0 0.0
    %2156 = vmatmul.mubr.f32.gmra.mrb[0].mxu0 %v2086
    %v2157 = vpop.f32.mrb[0].mxu0
    %v2158 = vadd.f32 0.0, %v2157
    %v2159 = vpop.f32.mrb[0].mxu0
    %2160 = vmatprep.mubr.f32.mxu0 0.0
    %2161 = vmatmul.mubr.f32.gmra.mrb[0].mxu0 %v2089
    %v2162 = vpop.f32.mrb[0].mxu0
    %v2163 = vadd.f32 0.0, %v2162
    %v2164 = vpop.f32.mrb[0].mxu0
    %2165 = vdwg.mxu0
    %2168 = vrot.lane.b32.xlu0 %v2158, 24
    %v2169 = vpop.permute.xlu0 %2168
    %2170 = vrot.lane.b32.xlu0 %v2163, 24
    %v2171 = vpop.permute.xlu0 %2170
    %2174 = vst.msk [vmem:[#allocation2] sm:$0xff] %vm1015, %v2169
    %2175 = vst.msk [vmem:[#allocation2 + $0x8] sm:$0xff] %vm1015, %v2171
    %v2176 = vld [vmem:[#allocation2] sm:$0xff]
    %v2177 = vld [vmem:[#allocation2 + $0x8] sm:$0xff]
    %v2178 = vlaneseq
    %v2179 = vshrl.u32 %v2178, 7
    %v2180 = vsub.s32 0, %v2179
    %v2181 = vrot.slane %v1347, %v2180
    %v2183 = vsel %vm27, %v2176, 0
    %v2186 = vsel %vm27, %v2177, 0
    %2188 = vmatprep.subr.mxu0 0.0
    %2189 = vmatpush1.msra.mxu0 %v1343
    %2190 = vmatprep.subr.mxu0 0.0
    %2191 = vmatpush1.msra.mxu0 %v1344
    %2192 = vmatprep.subr.mxu0 0.0
    %2193 = vmatpush1.msra.mxu0 %v1345
    %2194 = vmatprep.subr.mxu0 0.0
    %2195 = vmatpush1.msra.mxu0 %v1346
    %2196 = vmatprep.subr.mxu0 0.0
    %2197 = vmatpush1.msra.mxu0 0.0
    %2198 = vmatprep.subr.mxu0 0.0
    %2199 = vmatpush1.msra.mxu0 0.0
    %2200 = vmatprep.subr.mxu0 0.0
    %2201 = vmatpush1.msra.mxu0 0.0
    %2202 = vmatprep.subr.mxu0 0.0
    %2203 = vmatpush1.msra.mxu0 0.0
    %2204 = vmatprep.subr.mxu0 0.0
    %2205 = vmatpush1.msra.mxu0 0.0
    %2206 = vmatprep.subr.mxu0 0.0
    %2207 = vmatpush1.msra.mxu0 0.0
    %2208 = vmatprep.subr.mxu0 0.0
    %2209 = vmatpush1.msra.mxu0 0.0
    %2210 = vmatprep.subr.mxu0 0.0
    %2211 = vmatpush1.msra.mxu0 0.0
    %2212 = vmatprep.subr.mxu0 0.0
    %2213 = vmatpush1.msra.mxu0 0.0
    %2214 = vmatprep.subr.mxu0 0.0
    %2215 = vmatpush1.msra.mxu0 0.0
    %2216 = vmatprep.subr.mxu0 0.0
    %2217 = vmatpush1.msra.mxu0 0.0
    %2218 = vmatprep.subr.mxu0 0.0
    %2219 = vmatpush1.msra.mxu0 0.0
    %2220 = vmatprep.subr.mxu0 0.0
    %2221 = vmatpush1.msra.mxu0 0.0
    %2222 = vmatprep.subr.mxu0 0.0
    %2223 = vmatpush1.msra.mxu0 0.0
    %2224 = vmatprep.subr.mxu0 0.0
    %2225 = vmatpush1.msra.mxu0 0.0
    %2226 = vmatprep.subr.mxu0 0.0
    %2227 = vmatpush1.msra.mxu0 0.0
    %2228 = vmatprep.subr.mxu0 0.0
    %2229 = vmatpush1.msra.mxu0 0.0
    %2230 = vmatprep.subr.mxu0 0.0
    %2231 = vmatpush1.msra.mxu0 0.0
    %2232 = vmatprep.subr.mxu0 0.0
    %2233 = vmatpush1.msra.mxu0 0.0
    %2234 = vmatprep.subr.mxu0 0.0
    %2235 = vmatpush1.msra.mxu0 0.0
    %2236 = vmatprep.subr.mxu0 0.0
    %2237 = vmatpush1.msra.mxu0 0.0
    %2238 = vmatprep.subr.mxu0 0.0
    %2239 = vmatpush1.msra.mxu0 0.0
    %2240 = vmatprep.subr.mxu0 0.0
    %2241 = vmatpush1.msra.mxu0 0.0
    %2242 = vmatprep.subr.mxu0 0.0
    %2243 = vmatpush1.msra.mxu0 0.0
    %2244 = vmatprep.subr.mxu0 0.0
    %2245 = vmatpush1.msra.mxu0 0.0
    %2246 = vmatprep.subr.mxu0 0.0
    %2247 = vmatpush1.msra.mxu0 0.0
    %2248 = vmatprep.subr.mxu0 0.0
    %2249 = vmatpush1.msra.mxu0 0.0
    %2250 = vmatprep.subr.mxu0 0.0
    %2251 = vmatpush1.msra.mxu0 0.0
    %2252 = vmatprep.mubr.f32.mxu0 0.0
    %2253 = vmatmul.mubr.f32.gmra.mrb[0].mxu0 %v2183
    %v2254 = vpop.f32.mrb[0].mxu0
    %v2255 = vadd.f32 %v2181, %v2254
    %v2256 = vpop.f32.mrb[0].mxu0
    %2257 = vmatprep.mubr.f32.mxu0 0.0
    %2258 = vmatmul.mubr.f32.gmra.mrb[0].mxu0 %v2186
    %v2259 = vpop.f32.mrb[0].mxu0
    %v2260 = vadd.f32 %v2181, %v2259
    %v2261 = vpop.f32.mrb[0].mxu0
    %2262 = vdwg.mxu0
    %v2263 = vadd.f32 %v1105, %v2255
    %v2264 = vadd.f32 %v1106, %v2260
    %v2265 = vsel %vm27, %v2263, 0.0
    %2266 = vadd.xlane.f32.xlu0 %v2265
    %v2267 = vpop.xlane.xlu0 %2266
    %v2268 = vsel %vm27, %v2264, 0.0
    %2269 = vadd.xlane.f32.xlu0 %v2268
    %v2270 = vpop.xlane.xlu0 %2269
    %v2271 = vmul.f32 %v2267, %v34
    %v2272 = vmul.f32 %v2270, %v34
    %v2273 = vsub.f32 %v2263, %v2271
    %v2274 = vsub.f32 %v2264, %v2272
    %v2275 = vmul.f32 %v2273, %v2273
    %v2276 = vmul.f32 %v2274, %v2274
    %v2277 = vsel %vm27, %v2275, 0.0
    %2278 = vadd.xlane.f32.xlu0 %v2277
    %v2279 = vpop.xlane.xlu0 %2278
    %v2280 = vsel %vm27, %v2276, 0.0
    %2281 = vadd.xlane.f32.xlu0 %v2280
    %v2282 = vpop.xlane.xlu0 %2281
    %v2283 = vmul.f32 %v2279, %v47
    %v2284 = vmul.f32 %v2282, %v47
    %v2285 = vlaneseq
    %v2286 = vshrl.u32 %v2285, 7
    %v2287 = vsub.s32 2, %v2286
    %v2288 = vrot.slane %v25, %v2287
    %v2289 = vmul.f32 %v2288, %v2273
    %v2290 = vmul.f32 %v2288, %v2274
    %v2291 = vrsqrt.pop %v2283
    %v2292 = vmul.f32 %v2283, %v2291
    %vm2293 = vcmp.eq.f32.partialorder %v2283, inf
    %v2294 = vsel %vm2293, %v2283, %v2292
    %vm2295 = vcmp.eq.f32.partialorder %v2283, 0.0
    %v2296 = vand.u32 %v2283, 2147483648
    %v2297 = vsel %vm2295, %v2296, %v2294
    %v2298 = vrsqrt.pop %v2284
    %v2299 = vmul.f32 %v2284, %v2298
    %vm2300 = vcmp.eq.f32.partialorder %v2284, inf
    %v2301 = vsel %vm2300, %v2284, %v2299
    %vm2302 = vcmp.eq.f32.partialorder %v2284, 0.0
    %v2303 = vand.u32 %v2284, 2147483648
    %v2304 = vsel %vm2302, %v2303, %v2301
    %v2305 = vadd.f32 %v2297, 1e-06
    %v2306 = vadd.f32 %v2304, 1e-06
    %v2307 = vrcp.pop %v2305
    %v2308 = vmul.f32 %v2289, %v2307
    %v2309 = vrcp.pop %v2306
    %v2310 = vmul.f32 %v2290, %v2309
    %v2311 = vlaneseq
    %v2312 = vshrl.u32 %v2311, 7
    %v2313 = vsub.s32 2, %v2312
    %v2314 = vrot.slane %v26, %v2313
    %v2315 = vadd.f32 %v2308, %v2314
    %v2316 = vadd.f32 %v2310, %v2314
    %v2317 = vld [vmem:[%s4 + $0xa0] sm:$0xff]
    %v2318 = vld [vmem:[%s4 + $0xa8] sm:$0xff]
    %v2319 = vld [vmem:[%s4 + $0xb0] sm:$0xff]
    %v2320 = vld [vmem:[%s4 + $0xb8] sm:$0xff]
    %v2321 = vld [vmem:[%s4 + $0x128] sm:$0x1]
    %v2322 = vlaneseq
    %v2323 = vshrl.u32 %v2322, 7
    %v2324 = vsub.s32 0, %v2323
    %v2325 = vrot.slane %v2321, %v2324
    %v2327 = vsel %vm27, %v2315, 0
    %v2330 = vsel %vm27, %v2316, 0
    %2332 = vmatprep.subr.mxu0 0.0
    %2333 = vmatpush1.msra.mxu0 %v2317
    %2334 = vmatprep.subr.mxu0 0.0
    %2335 = vmatpush1.msra.mxu0 %v2318
    %2336 = vmatprep.subr.mxu0 0.0
    %2337 = vmatpush1.msra.mxu0 %v2319
    %2338 = vmatprep.subr.mxu0 0.0
    %2339 = vmatpush1.msra.mxu0 %v2320
    %2340 = vmatprep.subr.mxu0 0.0
    %2341 = vmatpush1.msra.mxu0 0.0
    %2342 = vmatprep.subr.mxu0 0.0
    %2343 = vmatpush1.msra.mxu0 0.0
    %2344 = vmatprep.subr.mxu0 0.0
    %2345 = vmatpush1.msra.mxu0 0.0
    %2346 = vmatprep.subr.mxu0 0.0
    %2347 = vmatpush1.msra.mxu0 0.0
    %2348 = vmatprep.subr.mxu0 0.0
    %2349 = vmatpush1.msra.mxu0 0.0
    %2350 = vmatprep.subr.mxu0 0.0
    %2351 = vmatpush1.msra.mxu0 0.0
    %2352 = vmatprep.subr.mxu0 0.0
    %2353 = vmatpush1.msra.mxu0 0.0
    %2354 = vmatprep.subr.mxu0 0.0
    %2355 = vmatpush1.msra.mxu0 0.0
    %2356 = vmatprep.subr.mxu0 0.0
    %2357 = vmatpush1.msra.mxu0 0.0
    %2358 = vmatprep.subr.mxu0 0.0
    %2359 = vmatpush1.msra.mxu0 0.0
    %2360 = vmatprep.subr.mxu0 0.0
    %2361 = vmatpush1.msra.mxu0 0.0
    %2362 = vmatprep.subr.mxu0 0.0
    %2363 = vmatpush1.msra.mxu0 0.0
    %2364 = vmatprep.subr.mxu0 0.0
    %2365 = vmatpush1.msra.mxu0 0.0
    %2366 = vmatprep.subr.mxu0 0.0
    %2367 = vmatpush1.msra.mxu0 0.0
    %2368 = vmatprep.subr.mxu0 0.0
    %2369 = vmatpush1.msra.mxu0 0.0
    %2370 = vmatprep.subr.mxu0 0.0
    %2371 = vmatpush1.msra.mxu0 0.0
    %2372 = vmatprep.subr.mxu0 0.0
    %2373 = vmatpush1.msra.mxu0 0.0
    %2374 = vmatprep.subr.mxu0 0.0
    %2375 = vmatpush1.msra.mxu0 0.0
    %2376 = vmatprep.subr.mxu0 0.0
    %2377 = vmatpush1.msra.mxu0 0.0
    %2378 = vmatprep.subr.mxu0 0.0
    %2379 = vmatpush1.msra.mxu0 0.0
    %2380 = vmatprep.subr.mxu0 0.0
    %2381 = vmatpush1.msra.mxu0 0.0
    %2382 = vmatprep.subr.mxu0 0.0
    %2383 = vmatpush1.msra.mxu0 0.0
    %2384 = vmatprep.subr.mxu0 0.0
    %2385 = vmatpush1.msra.mxu0 0.0
    %2386 = vmatprep.subr.mxu0 0.0
    %2387 = vmatpush1.msra.mxu0 0.0
    %2388 = vmatprep.subr.mxu0 0.0
    %2389 = vmatpush1.msra.mxu0 0.0
    %2390 = vmatprep.subr.mxu0 0.0
    %2391 = vmatpush1.msra.mxu0 0.0
    %2392 = vmatprep.subr.mxu0 0.0
    %2393 = vmatpush1.msra.mxu0 0.0
    %2394 = vmatprep.subr.mxu0 0.0
    %2395 = vmatpush1.msra.mxu0 0.0
    %2396 = vmatprep.mubr.f32.mxu0 0.0
    %2397 = vmatmul.mubr.f32.gmra.mrb[0].mxu0 %v2327
    %v2398 = vpop.f32.mrb[0].mxu0
    %v2399 = vadd.f32 %v2325, %v2398
    %v2400 = vpop.f32.mrb[0].mxu0
    %2401 = vmatprep.mubr.f32.mxu0 0.0
    %2402 = vmatmul.mubr.f32.gmra.mrb[0].mxu0 %v2330
    %v2403 = vpop.f32.mrb[0].mxu0
    %v2404 = vadd.f32 %v2325, %v2403
    %v2405 = vpop.f32.mrb[0].mxu0
    %2406 = vdwg.mxu0
    %v2407 = vmax.f32 %v2399, 0.0
    %v2408 = vmax.f32 %v2404, 0.0
    %v2409 = vld [vmem:[%s4 + $0xc0] sm:$0xff]
    %v2410 = vld [vmem:[%s4 + $0xc8] sm:$0xff]
    %v2411 = vld [vmem:[%s4 + $0xd0] sm:$0xff]
    %v2412 = vld [vmem:[%s4 + $0xd8] sm:$0xff]
    %v2413 = vld [vmem:[%s4 + $0xe0] sm:$0xff]
    %v2414 = vld [vmem:[%s4 + $0xe8] sm:$0xff]
    %v2415 = vld [vmem:[%s4 + $0xf0] sm:$0xff]
    %v2416 = vld [vmem:[%s4 + $0xf8] sm:$0xff]
    %vm2417 = vcmask 523264
    %v2419 = vsel %vm2417, %v2407, 0
    %v2422 = vsel %vm2417, %v2408, 0
    %2424 = vmatprep.subr.mxu0 0.0
    %2425 = vmatpush1.msra.mxu0 %v2409
    %2426 = vmatprep.subr.mxu0 0.0
    %2427 = vmatpush1.msra.mxu0 %v2410
    %2428 = vmatprep.subr.mxu0 0.0
    %2429 = vmatpush1.msra.mxu0 %v2411
    %2430 = vmatprep.subr.mxu0 0.0
    %2431 = vmatpush1.msra.mxu0 %v2412
    %2432 = vmatprep.subr.mxu0 0.0
    %2433 = vmatpush1.msra.mxu0 %v2413
    %2434 = vmatprep.subr.mxu0 0.0
    %2435 = vmatpush1.msra.mxu0 %v2414
    %2436 = vmatprep.subr.mxu0 0.0
    %2437 = vmatpush1.msra.mxu0 %v2415
    %2438 = vmatprep.subr.mxu0 0.0
    %2439 = vmatpush1.msra.mxu0 %v2416
    %2440 = vmatprep.subr.mxu0 0.0
    %2441 = vmatpush1.msra.mxu0 0.0
    %2442 = vmatprep.subr.mxu0 0.0
    %2443 = vmatpush1.msra.mxu0 0.0
    %2444 = vmatprep.subr.mxu0 0.0
    %2445 = vmatpush1.msra.mxu0 0.0
    %2446 = vmatprep.subr.mxu0 0.0
    %2447 = vmatpush1.msra.mxu0 0.0
    %2448 = vmatprep.subr.mxu0 0.0
    %2449 = vmatpush1.msra.mxu0 0.0
    %2450 = vmatprep.subr.mxu0 0.0
    %2451 = vmatpush1.msra.mxu0 0.0
    %2452 = vmatprep.subr.mxu0 0.0
    %2453 = vmatpush1.msra.mxu0 0.0
    %2454 = vmatprep.subr.mxu0 0.0
    %2455 = vmatpush1.msra.mxu0 0.0
    %2456 = vmatprep.subr.mxu0 0.0
    %2457 = vmatpush1.msra.mxu0 0.0
    %2458 = vmatprep.subr.mxu0 0.0
    %2459 = vmatpush1.msra.mxu0 0.0
    %2460 = vmatprep.subr.mxu0 0.0
    %2461 = vmatpush1.msra.mxu0 0.0
    %2462 = vmatprep.subr.mxu0 0.0
    %2463 = vmatpush1.msra.mxu0 0.0
    %2464 = vmatprep.subr.mxu0 0.0
    %2465 = vmatpush1.msra.mxu0 0.0
    %2466 = vmatprep.subr.mxu0 0.0
    %2467 = vmatpush1.msra.mxu0 0.0
    %2468 = vmatprep.subr.mxu0 0.0
    %2469 = vmatpush1.msra.mxu0 0.0
    %2470 = vmatprep.subr.mxu0 0.0
    %2471 = vmatpush1.msra.mxu0 0.0
    %2472 = vmatprep.subr.mxu0 0.0
    %2473 = vmatpush1.msra.mxu0 0.0
    %2474 = vmatprep.subr.mxu0 0.0
    %2475 = vmatpush1.msra.mxu0 0.0
    %2476 = vmatprep.subr.mxu0 0.0
    %2477 = vmatpush1.msra.mxu0 0.0
    %2478 = vmatprep.subr.mxu0 0.0
    %2479 = vmatpush1.msra.mxu0 0.0
    %2480 = vmatprep.subr.mxu0 0.0
    %2481 = vmatpush1.msra.mxu0 0.0
    %2482 = vmatprep.subr.mxu0 0.0
    %2483 = vmatpush1.msra.mxu0 0.0
    %2484 = vmatprep.subr.mxu0 0.0
    %2485 = vmatpush1.msra.mxu0 0.0
    %2486 = vmatprep.subr.mxu0 0.0
    %2487 = vmatpush1.msra.mxu0 0.0
    %2488 = vmatprep.mubr.f32.mxu0 0.0
    %2489 = vmatmul.mubr.f32.gmra.mrb[0].mxu0 %v2419
    %v2490 = vpop.f32.mrb[0].mxu0
    %v2491 = vadd.f32 0.0, %v2490
    %v2492 = vpop.f32.mrb[0].mxu0
    %2493 = vmatprep.mubr.f32.mxu0 0.0
    %2494 = vmatmul.mubr.f32.gmra.mrb[0].mxu0 %v2422
    %v2495 = vpop.f32.mrb[0].mxu0
    %v2496 = vadd.f32 0.0, %v2495
    %v2497 = vpop.f32.mrb[0].mxu0
    %2498 = vdwg.mxu0
    %v2499 = vadd.f32 %v2263, %v2491
    %v2500 = vadd.f32 %v2264, %v2496
    %v2501 = vld [vmem:[%s4 + $0x130] sm:$0x1]
    %v2502 = vlaneseq
    %v2503 = vshrl.u32 %v2502, 7
    %v2504 = vsub.s32 0, %v2503
    %v2505 = vrot.slane %v2501, %v2504
    %v2506 = vadd.f32 %v2499, %v2505
    %v2507 = vadd.f32 %v2500, %v2505
    %2508 = vst.msk [vmem:[#allocation3] sm:$0xff] %vm27, %v2506
    %2509 = vst.msk [vmem:[#allocation3 + $0x8] sm:$0xff] %vm27, %v2507
    // Predicated region
    $region22: #{decoder_layer.1} parent=1 // pred_check
      _
    $region23: #{decoder_layer.1} parent=1 // pred_check_branch
      %2511 = sbr.rel (0) target = $region25
    $region24: #{decoder_layer.1} parent=1 // pred_region
      %s2513 = ssub.s32 256, 256
      %2514 = vsyncadd [#allocation4], %s2513
      %s2515 = sshll.u32 [#allocation3], 4
      %s2516 = int_to_ptr.vmem [resolvable:$true] %s2515
      %2521 = dma.vmem_to_hbm [thread:$0]  %s2516, 256, %s5, [#allocation4], 128, 128, 8
    $region25: #{decoder_layer.1} parent=1 // pred_fallthru
      _
    // Predicated region
    $region26: #{decoder_layer.1} parent=1 // pred_check
      _
    $region27: #{decoder_layer.1} parent=1 // pred_check_branch
      %2523 = sbr.rel (0) target = $region29
    $region28: #{decoder_layer.1} parent=1 // pred_region
      %2524 = dma.done [#allocation4], 256
    $region29: #{decoder_layer.1} parent=1 // pred_fallthru
      _
    %2525 = vsyncpa [#allocation4], 1

</llo_original>
